<compile_context>
chip_gen: v7x
topology: tpu7x:2x2x1
jax: 0.10.0
libtpu: 0.0.40
codegen_flags: <defaults>
</compile_context>

<pallas_src>
import jax
import jax.numpy as jnp
import numpy as np
from jax.experimental import pallas as pl
from jax.experimental.pallas import tpu as pltpu


def _gru_kernel(y_mu_ref, y_std_ref, data_ref, mask_ref,
                w1g_ymu_ref, w1g_ystd_ref, w1g_d_ref, w1g_m_ref, b1g_ref,
                w2u_ref, b2u_ref, w2r_ref, b2r_ref,
                w1n_ymu_ref, w1n_ystd_ref, w1n_d_ref, w1n_m_ref, b1n_ref,
                w2n_mu_ref, b2n_mu_ref, w2n_std_ref, b2n_std_ref,
                out_ref):
    # bf16 tiles feed the MXU; all accumulation / gate / blend math is f32.
    y_mu = y_mu_ref[...]
    y_std = y_std_ref[...]
    data = data_ref[...]
    mask = mask_ref[...]
    io_dtype = y_mu.dtype

    def mm(a, w_ref):
        return jnp.dot(a, w_ref[...], preferred_element_type=jnp.float32)

    # --- fused first layer of update+reset gates (no lane-axis concat) ---
    h_g = jnp.tanh(mm(y_mu, w1g_ymu_ref) + mm(y_std, w1g_ystd_ref)
                   + mm(data, w1g_d_ref) + mm(mask, w1g_m_ref)
                   + b1g_ref[...])                       # [rows, 2H] f32
    h_g = h_g.astype(io_dtype)

    # --- gate second layers: zero-padded weights -> no hidden slicing ---
    u = jax.nn.sigmoid(mm(h_g, w2u_ref) + b2u_ref[...])  # update gate [rows, L]
    r = jax.nn.sigmoid(mm(h_g, w2r_ref) + b2r_ref[...])  # reset  gate [rows, L]

    y_mu_f = y_mu.astype(jnp.float32)
    y_std_f = y_std.astype(jnp.float32)
    ym_r = (y_mu_f * r).astype(io_dtype)
    ys_r = (y_std_f * r).astype(io_dtype)

    # --- new_state_net (reset-gated inputs, split weights again) ---
    h_n = jnp.tanh(mm(ym_r, w1n_ymu_ref) + mm(ys_r, w1n_ystd_ref)
                   + mm(data, w1n_d_ref) + mm(mask, w1n_m_ref)
                   + b1n_ref[...])                       # [rows, H] f32
    h_n = h_n.astype(io_dtype)

    ns_mu = mm(h_n, w2n_mu_ref) + b2n_mu_ref[...]               # [rows, L]
    ns_std = jnp.abs(mm(h_n, w2n_std_ref) + b2n_std_ref[...])   # [rows, L]

    new_y = (1.0 - u) * ns_mu + u * y_mu_f
    new_y_std = (1.0 - u) * ns_std + u * y_std_f

    # masked update (mask width == latent width)
    m = mask.astype(jnp.float32)
    new_y = m * new_y + (1.0 - m) * y_mu_f
    new_y_std = jnp.abs(m * new_y_std + (1.0 - m) * y_std_f)

    # single lane-dense store: [new_y || new_y_std]
    out_ref[...] = jnp.concatenate([new_y, new_y_std], axis=-1)


def _round_up(a, b):
    return (a + b - 1) // b * b


def custom_gru_forward(y_mu, y_std, x, params, *, row_tile=512):
    """Pallas TPU forward of custom_GRU (masked_update=True)."""
    B, T, L = y_mu.shape
    D = x.shape[-1]
    assert D == 2 * L, "masked update requires input_dim == 2 * latent_dim"
    N = B * T
    C = 2 * L + D

    # Large tiles amortize the ~0.35us/step pipeline overhead; keep >=2 grid
    # steps (when N allows) so the parallel axis shards across v7x's 2 TCs.
    # Min 16 sublanes keeps bf16 blocks on native (16,128) tile boundaries.
    row_tile = max(16, min(row_tile, _round_up(pl.cdiv(N, 2), 16)))
    N_pad = _round_up(N, row_tile)
    grid = N_pad // row_tile

    io_dtype = jnp.bfloat16
    f32 = jnp.float32

    def flat(a):
        a2 = a.reshape(N, -1).astype(io_dtype)
        return jnp.pad(a2, ((0, N_pad - N), (0, 0)))

    y_mu2 = flat(y_mu)
    y_std2 = flat(y_std)
    data2 = flat(x[..., :L])
    mask2 = flat(x[..., L:])

    (w1u, b1u, w2u, b2u,
     w1r, b1r, w2r, b2r,
     w1n, b1n, w2n, b2n) = params
    H = w1u.shape[1]
    assert w1u.shape[0] == C

    # Fused update|reset first layer, row-split by (virtual) concat segment.
    w1g = jnp.concatenate([w1u, w1r], axis=1)                 # [C, 2H]
    b1g = jnp.concatenate([b1u, b1r], axis=1).astype(f32)     # [1, 2H]
    w1g_ymu, w1g_ystd = w1g[:L], w1g[L:2 * L]
    w1g_d, w1g_m = w1g[2 * L:3 * L], w1g[3 * L:]

    zH = jnp.zeros((H, L), f32)
    w2u_p = jnp.concatenate([w2u, zH], axis=0)                # [2H, L]
    w2r_p = jnp.concatenate([zH, w2r], axis=0)                # [2H, L]

    w1n_ymu, w1n_ystd = w1n[:L], w1n[L:2 * L]
    w1n_d, w1n_m = w1n[2 * L:3 * L], w1n[3 * L:]
    w2n_mu, w2n_std = w2n[:, :L], w2n[:, L:]
    b2n_mu, b2n_std = b2n[:, :L], b2n[:, L:]

    wc = lambda w: w.astype(io_dtype)
    bc = lambda b: b.astype(f32)
    weight_args = (
        wc(w1g_ymu), wc(w1g_ystd), wc(w1g_d), wc(w1g_m), bc(b1g),
        wc(w2u_p), bc(b2u), wc(w2r_p), bc(b2r),
        wc(w1n_ymu), wc(w1n_ystd), wc(w1n_d), wc(w1n_m), bc(b1n),
        wc(w2n_mu), bc(b2n_mu), wc(w2n_std), bc(b2n_std),
    )

    row_spec = pl.BlockSpec((row_tile, L), lambda i: (i, 0))
    out_spec = pl.BlockSpec((row_tile, 2 * L), lambda i: (i, 0))

    def full(a):
        return pl.BlockSpec(a.shape, lambda i: (0, 0))

    out = pl.pallas_call(
        _gru_kernel,
        out_shape=jax.ShapeDtypeStruct((N_pad, 2 * L), jnp.float32),
        grid_spec=pltpu.PrefetchScalarGridSpec(
            num_scalar_prefetch=0,
            grid=(grid,),
            in_specs=[row_spec, row_spec, row_spec, row_spec]
                     + [full(w) for w in weight_args],
            out_specs=out_spec,
        ),
        compiler_params=pltpu.CompilerParams(
            dimension_semantics=("parallel",),
            vmem_limit_bytes=48 * 1024 * 1024,
        ),
    )(y_mu2, y_std2, data2, mask2, *weight_args)

    new_y = out[:N, :L].reshape(B, T, L)
    new_y_std = out[:N, L:].reshape(B, T, L)
    return new_y, new_y_std


def ref_forward(y_mu, y_std, x, params):
    """Pure-JAX f32 reference mirroring the PyTorch forward (masked_update=True)."""
    (w1u, b1u, w2u, b2u,
     w1r, b1r, w2r, b2r,
     w1n, b1n, w2n, b2n) = params
    L = y_mu.shape[-1]

    def mlp(inp, w1, b1, w2, b2):
        return jnp.tanh(inp @ w1 + b1) @ w2 + b2

    y_concat = jnp.concatenate([y_mu, y_std, x], -1)
    u = jax.nn.sigmoid(mlp(y_concat, w1u, b1u, w2u, b2u))
    r = jax.nn.sigmoid(mlp(y_concat, w1r, b1r, w2r, b2r))
    concat = jnp.concatenate([y_mu * r, y_std * r, x], -1)
    ns = mlp(concat, w1n, b1n, w2n, b2n)
    new_state, new_state_std = ns[..., :L], jnp.abs(ns[..., L:])
    new_y = (1 - u) * new_state + u * y_mu
    new_y_std = (1 - u) * new_state_std + u * y_std
    n_data_dim = x.shape[-1] // 2
    mask = x[..., n_data_dim:]
    new_y = mask * new_y + (1 - mask) * y_mu
    new_y_std = mask * new_y_std + (1 - mask) * y_std
    return new_y, jnp.abs(new_y_std)


def init_params(key, latent_dim, input_dim, n_units):
    """Deterministic stand-in for utils.init_weight (small gaussian weights).
    Linear weights stored as [in_features, out_features]."""
    C = latent_dim * 2 + input_dim
    keys = jax.random.split(key, 12)

    def lin(k, fan_in, fan_out):
        return 0.1 * jax.random.normal(k, (fan_in, fan_out), jnp.float32)

    w1u = lin(keys[0], C, n_units)
    b1u = 0.1 * jax.random.normal(keys[1], (1, n_units), jnp.float32)
    w2u = lin(keys[2], n_units, latent_dim)
    b2u = 0.1 * jax.random.normal(keys[3], (1, latent_dim), jnp.float32)

    w1r = lin(keys[4], C, n_units)
    b1r = 0.1 * jax.random.normal(keys[5], (1, n_units), jnp.float32)
    w2r = lin(keys[6], n_units, latent_dim)
    b2r = 0.1 * jax.random.normal(keys[7], (1, latent_dim), jnp.float32)

    w1n = lin(keys[8], C, n_units)
    b1n = 0.1 * jax.random.normal(keys[9], (1, n_units), jnp.float32)
    w2n = lin(keys[10], n_units, 2 * latent_dim)
    b2n = 0.1 * jax.random.normal(keys[11], (1, 2 * latent_dim), jnp.float32)

    return (w1u, b1u, w2u, b2u, w1r, b1r, w2r, b2r, w1n, b1n, w2n, b2n)


if __name__ == "__main__":
    B, T = 2, 8
    latent_dim = 32
    input_dim = 2 * latent_dim   # data half + mask half
    n_units = 16

    key = jax.random.PRNGKey(0)
    k_mu, k_std, k_x, k_mask, k_p = jax.random.split(key, 5)

    y_mu = jax.random.normal(k_mu, (B, T, latent_dim), jnp.float32)
    y_std = jnp.abs(jax.random.normal(k_std, (B, T, latent_dim), jnp.float32))
    mask = jax.random.bernoulli(k_mask, 0.7, (B, T, input_dim // 2)).astype(jnp.float32)
    data = jax.random.normal(k_x, (B, T, input_dim // 2), jnp.float32) * mask
    x = jnp.concatenate([data, mask], axis=-1)   # satisfies utils.check_mask

    params = init_params(k_p, latent_dim, input_dim, n_units)

    new_y, new_y_std = custom_gru_forward(y_mu, y_std, x, params)
    jax.block_until_ready((new_y, new_y_std))

    ref_y, ref_y_std = ref_forward(y_mu, y_std, x, params)

    assert new_y.shape == (B, T, latent_dim)
    assert new_y_std.shape == (B, T, latent_dim)
    assert not bool(jnp.isnan(new_y).any()), "Nan was found inside the output !"
    # bf16 MXU inputs vs f32 reference -> slightly looser tolerance.
    np.testing.assert_allclose(np.asarray(new_y), np.asarray(ref_y),
                               rtol=3e-2, atol=3e-2)
    np.testing.assert_allclose(np.asarray(new_y_std), np.asarray(ref_y_std),
                               rtol=3e-2, atol=3e-2)
    print("KERNEL_OK")
</pallas_src>

<mosaic_0001>
module attributes {stable_mosaic.version = 11 : i64} {
  func.func @_gru_kernel(%arg0: i32, %arg1: memref<16x32xbf16, #tpu.memory_space<vmem>>, %arg2: memref<16x32xbf16, #tpu.memory_space<vmem>>, %arg3: memref<16x32xbf16, #tpu.memory_space<vmem>>, %arg4: memref<16x32xbf16, #tpu.memory_space<vmem>>, %arg5: memref<32x32xbf16, #tpu.memory_space<vmem>>, %arg6: memref<32x32xbf16, #tpu.memory_space<vmem>>, %arg7: memref<32x32xbf16, #tpu.memory_space<vmem>>, %arg8: memref<32x32xbf16, #tpu.memory_space<vmem>>, %arg9: memref<1x32xf32, #tpu.memory_space<vmem>>, %arg10: memref<32x32xbf16, #tpu.memory_space<vmem>>, %arg11: memref<1x32xf32, #tpu.memory_space<vmem>>, %arg12: memref<32x32xbf16, #tpu.memory_space<vmem>>, %arg13: memref<1x32xf32, #tpu.memory_space<vmem>>, %arg14: memref<32x16xbf16, #tpu.memory_space<vmem>>, %arg15: memref<32x16xbf16, #tpu.memory_space<vmem>>, %arg16: memref<32x16xbf16, #tpu.memory_space<vmem>>, %arg17: memref<32x16xbf16, #tpu.memory_space<vmem>>, %arg18: memref<1x16xf32, #tpu.memory_space<vmem>>, %arg19: memref<16x32xbf16, #tpu.memory_space<vmem>>, %arg20: memref<1x32xf32, #tpu.memory_space<vmem>>, %arg21: memref<16x32xbf16, #tpu.memory_space<vmem>>, %arg22: memref<1x32xf32, #tpu.memory_space<vmem>>, %arg23: memref<16x64xf32, #tpu.memory_space<vmem>>) attributes {dimension_semantics = [#tpu.dimension_semantics<parallel>], iteration_bounds = array<i64: 1>, scalar_prefetch = 0 : i64, scratch_operands = 0 : i64, tpu.core_type = #tpu.core_type<tc>, window_params = [{transform_indices = @transform_0, window_bounds = array<i64: 16, 32>}, {transform_indices = @transform_1, window_bounds = array<i64: 16, 32>}, {transform_indices = @transform_2, window_bounds = array<i64: 16, 32>}, {transform_indices = @transform_3, window_bounds = array<i64: 16, 32>}, {pipeline_mode = #tpu.pipeline_mode<synchronous>, transform_indices = @transform_4, window_bounds = array<i64: 32, 32>}, {pipeline_mode = #tpu.pipeline_mode<synchronous>, transform_indices = @transform_5, window_bounds = array<i64: 32, 32>}, {pipeline_mode = #tpu.pipeline_mode<synchronous>, transform_indices = @transform_6, window_bounds = array<i64: 32, 32>}, {pipeline_mode = #tpu.pipeline_mode<synchronous>, transform_indices = @transform_7, window_bounds = array<i64: 32, 32>}, {pipeline_mode = #tpu.pipeline_mode<synchronous>, transform_indices = @transform_8, window_bounds = array<i64: 1, 32>}, {pipeline_mode = #tpu.pipeline_mode<synchronous>, transform_indices = @transform_9, window_bounds = array<i64: 32, 32>}, {pipeline_mode = #tpu.pipeline_mode<synchronous>, transform_indices = @transform_10, window_bounds = array<i64: 1, 32>}, {pipeline_mode = #tpu.pipeline_mode<synchronous>, transform_indices = @transform_11, window_bounds = array<i64: 32, 32>}, {pipeline_mode = #tpu.pipeline_mode<synchronous>, transform_indices = @transform_12, window_bounds = array<i64: 1, 32>}, {pipeline_mode = #tpu.pipeline_mode<synchronous>, transform_indices = @transform_13, window_bounds = array<i64: 32, 16>}, {pipeline_mode = #tpu.pipeline_mode<synchronous>, transform_indices = @transform_14, window_bounds = array<i64: 32, 16>}, {pipeline_mode = #tpu.pipeline_mode<synchronous>, transform_indices = @transform_15, window_bounds = array<i64: 32, 16>}, {pipeline_mode = #tpu.pipeline_mode<synchronous>, transform_indices = @transform_16, window_bounds = array<i64: 32, 16>}, {pipeline_mode = #tpu.pipeline_mode<synchronous>, transform_indices = @transform_17, window_bounds = array<i64: 1, 16>}, {pipeline_mode = #tpu.pipeline_mode<synchronous>, transform_indices = @transform_18, window_bounds = array<i64: 16, 32>}, {pipeline_mode = #tpu.pipeline_mode<synchronous>, transform_indices = @transform_19, window_bounds = array<i64: 1, 32>}, {pipeline_mode = #tpu.pipeline_mode<synchronous>, transform_indices = @transform_20, window_bounds = array<i64: 16, 32>}, {pipeline_mode = #tpu.pipeline_mode<synchronous>, transform_indices = @transform_21, window_bounds = array<i64: 1, 32>}, {transform_indices = @transform_22, window_bounds = array<i64: 16, 64>}]} {
    %c0 = arith.constant 0 : index
    %c0_0 = arith.constant 0 : index
    %0 = vector.load %arg1[%c0, %c0_0] : memref<16x32xbf16, #tpu.memory_space<vmem>>, vector<16x32xbf16>
    %c0_1 = arith.constant 0 : index
    %c0_2 = arith.constant 0 : index
    %1 = vector.load %arg2[%c0_1, %c0_2] : memref<16x32xbf16, #tpu.memory_space<vmem>>, vector<16x32xbf16>
    %c0_3 = arith.constant 0 : index
    %c0_4 = arith.constant 0 : index
    %2 = vector.load %arg3[%c0_3, %c0_4] : memref<16x32xbf16, #tpu.memory_space<vmem>>, vector<16x32xbf16>
    %c0_5 = arith.constant 0 : index
    %c0_6 = arith.constant 0 : index
    %3 = vector.load %arg4[%c0_5, %c0_6] : memref<16x32xbf16, #tpu.memory_space<vmem>>, vector<16x32xbf16>
    %c0_7 = arith.constant 0 : index
    %c0_8 = arith.constant 0 : index
    %4 = vector.load %arg5[%c0_7, %c0_8] : memref<32x32xbf16, #tpu.memory_space<vmem>>, vector<32x32xbf16>
    %cst = arith.constant dense<0.000000e+00> : vector<16x32xf32>
    %5 = tpu.matmul %0, %4, %cst {dimension_numbers = #tpu.dot_dimension_numbers<[1], [0], [0], [1], [0, 0, 1, 1], [], []>} : vector<16x32xbf16>, vector<32x32xbf16>, vector<16x32xf32> -> vector<16x32xf32>
    %c0_9 = arith.constant 0 : index
    %c0_10 = arith.constant 0 : index
    %6 = vector.load %arg6[%c0_9, %c0_10] : memref<32x32xbf16, #tpu.memory_space<vmem>>, vector<32x32xbf16>
    %cst_11 = arith.constant dense<0.000000e+00> : vector<16x32xf32>
    %7 = tpu.matmul %1, %6, %cst_11 {dimension_numbers = #tpu.dot_dimension_numbers<[1], [0], [0], [1], [0, 0, 1, 1], [], []>} : vector<16x32xbf16>, vector<32x32xbf16>, vector<16x32xf32> -> vector<16x32xf32>
    %8 = arith.addf %5, %7 : vector<16x32xf32>
    %c0_12 = arith.constant 0 : index
    %c0_13 = arith.constant 0 : index
    %9 = vector.load %arg7[%c0_12, %c0_13] : memref<32x32xbf16, #tpu.memory_space<vmem>>, vector<32x32xbf16>
    %cst_14 = arith.constant dense<0.000000e+00> : vector<16x32xf32>
    %10 = tpu.matmul %2, %9, %cst_14 {dimension_numbers = #tpu.dot_dimension_numbers<[1], [0], [0], [1], [0, 0, 1, 1], [], []>} : vector<16x32xbf16>, vector<32x32xbf16>, vector<16x32xf32> -> vector<16x32xf32>
    %11 = arith.addf %8, %10 : vector<16x32xf32>
    %c0_15 = arith.constant 0 : index
    %c0_16 = arith.constant 0 : index
    %12 = vector.load %arg8[%c0_15, %c0_16] : memref<32x32xbf16, #tpu.memory_space<vmem>>, vector<32x32xbf16>
    %cst_17 = arith.constant dense<0.000000e+00> : vector<16x32xf32>
    %13 = tpu.matmul %3, %12, %cst_17 {dimension_numbers = #tpu.dot_dimension_numbers<[1], [0], [0], [1], [0, 0, 1, 1], [], []>} : vector<16x32xbf16>, vector<32x32xbf16>, vector<16x32xf32> -> vector<16x32xf32>
    %14 = arith.addf %11, %13 : vector<16x32xf32>
    %c0_18 = arith.constant 0 : index
    %c0_19 = arith.constant 0 : index
    %15 = vector.load %arg9[%c0_18, %c0_19] : memref<1x32xf32, #tpu.memory_space<vmem>>, vector<1x32xf32>
    %16 = vector.broadcast %15 : vector<1x32xf32> to vector<16x32xf32>
    %17 = arith.addf %14, %16 : vector<16x32xf32>
    %18 = math.tanh %17 : vector<16x32xf32>
    %19 = arith.truncf %18 : vector<16x32xf32> to vector<16x32xbf16>
    %c0_20 = arith.constant 0 : index
    %c0_21 = arith.constant 0 : index
    %20 = vector.load %arg10[%c0_20, %c0_21] : memref<32x32xbf16, #tpu.memory_space<vmem>>, vector<32x32xbf16>
    %cst_22 = arith.constant dense<0.000000e+00> : vector<16x32xf32>
    %21 = tpu.matmul %19, %20, %cst_22 {dimension_numbers = #tpu.dot_dimension_numbers<[1], [0], [0], [1], [0, 0, 1, 1], [], []>} : vector<16x32xbf16>, vector<32x32xbf16>, vector<16x32xf32> -> vector<16x32xf32>
    %c0_23 = arith.constant 0 : index
    %c0_24 = arith.constant 0 : index
    %22 = vector.load %arg11[%c0_23, %c0_24] : memref<1x32xf32, #tpu.memory_space<vmem>>, vector<1x32xf32>
    %23 = vector.broadcast %22 : vector<1x32xf32> to vector<16x32xf32>
    %24 = arith.addf %21, %23 : vector<16x32xf32>
    %25 = arith.negf %24 : vector<16x32xf32>
    %26 = math.exp %25 : vector<16x32xf32>
    %cst_25 = arith.constant 1.000000e+00 : f32
    %27 = vector.broadcast %cst_25 : f32 to vector<16x32xf32>
    %28 = arith.addf %27, %26 : vector<16x32xf32>
    %29 = arith.divf %27, %28 : vector<16x32xf32>
    %c0_26 = arith.constant 0 : index
    %c0_27 = arith.constant 0 : index
    %30 = vector.load %arg12[%c0_26, %c0_27] : memref<32x32xbf16, #tpu.memory_space<vmem>>, vector<32x32xbf16>
    %cst_28 = arith.constant dense<0.000000e+00> : vector<16x32xf32>
    %31 = tpu.matmul %19, %30, %cst_28 {dimension_numbers = #tpu.dot_dimension_numbers<[1], [0], [0], [1], [0, 0, 1, 1], [], []>} : vector<16x32xbf16>, vector<32x32xbf16>, vector<16x32xf32> -> vector<16x32xf32>
    %c0_29 = arith.constant 0 : index
    %c0_30 = arith.constant 0 : index
    %32 = vector.load %arg13[%c0_29, %c0_30] : memref<1x32xf32, #tpu.memory_space<vmem>>, vector<1x32xf32>
    %33 = vector.broadcast %32 : vector<1x32xf32> to vector<16x32xf32>
    %34 = arith.addf %31, %33 : vector<16x32xf32>
    %35 = arith.negf %34 : vector<16x32xf32>
    %36 = math.exp %35 : vector<16x32xf32>
    %cst_31 = arith.constant 1.000000e+00 : f32
    %37 = vector.broadcast %cst_31 : f32 to vector<16x32xf32>
    %38 = arith.addf %37, %36 : vector<16x32xf32>
    %39 = arith.divf %37, %38 : vector<16x32xf32>
    %40 = arith.extf %0 : vector<16x32xbf16> to vector<16x32xf32>
    %41 = arith.extf %1 : vector<16x32xbf16> to vector<16x32xf32>
    %42 = arith.mulf %40, %39 : vector<16x32xf32>
    %43 = arith.truncf %42 : vector<16x32xf32> to vector<16x32xbf16>
    %44 = arith.mulf %41, %39 : vector<16x32xf32>
    %45 = arith.truncf %44 : vector<16x32xf32> to vector<16x32xbf16>
    %c0_32 = arith.constant 0 : index
    %c0_33 = arith.constant 0 : index
    %46 = vector.load %arg14[%c0_32, %c0_33] : memref<32x16xbf16, #tpu.memory_space<vmem>>, vector<32x16xbf16>
    %cst_34 = arith.constant dense<0.000000e+00> : vector<16x16xf32>
    %47 = tpu.matmul %43, %46, %cst_34 {dimension_numbers = #tpu.dot_dimension_numbers<[1], [0], [0], [1], [0, 0, 1, 1], [], []>} : vector<16x32xbf16>, vector<32x16xbf16>, vector<16x16xf32> -> vector<16x16xf32>
    %c0_35 = arith.constant 0 : index
    %c0_36 = arith.constant 0 : index
    %48 = vector.load %arg15[%c0_35, %c0_36] : memref<32x16xbf16, #tpu.memory_space<vmem>>, vector<32x16xbf16>
    %cst_37 = arith.constant dense<0.000000e+00> : vector<16x16xf32>
    %49 = tpu.matmul %45, %48, %cst_37 {dimension_numbers = #tpu.dot_dimension_numbers<[1], [0], [0], [1], [0, 0, 1, 1], [], []>} : vector<16x32xbf16>, vector<32x16xbf16>, vector<16x16xf32> -> vector<16x16xf32>
    %50 = arith.addf %47, %49 : vector<16x16xf32>
    %c0_38 = arith.constant 0 : index
    %c0_39 = arith.constant 0 : index
    %51 = vector.load %arg16[%c0_38, %c0_39] : memref<32x16xbf16, #tpu.memory_space<vmem>>, vector<32x16xbf16>
    %cst_40 = arith.constant dense<0.000000e+00> : vector<16x16xf32>
    %52 = tpu.matmul %2, %51, %cst_40 {dimension_numbers = #tpu.dot_dimension_numbers<[1], [0], [0], [1], [0, 0, 1, 1], [], []>} : vector<16x32xbf16>, vector<32x16xbf16>, vector<16x16xf32> -> vector<16x16xf32>
    %53 = arith.addf %50, %52 : vector<16x16xf32>
    %c0_41 = arith.constant 0 : index
    %c0_42 = arith.constant 0 : index
    %54 = vector.load %arg17[%c0_41, %c0_42] : memref<32x16xbf16, #tpu.memory_space<vmem>>, vector<32x16xbf16>
    %cst_43 = arith.constant dense<0.000000e+00> : vector<16x16xf32>
    %55 = tpu.matmul %3, %54, %cst_43 {dimension_numbers = #tpu.dot_dimension_numbers<[1], [0], [0], [1], [0, 0, 1, 1], [], []>} : vector<16x32xbf16>, vector<32x16xbf16>, vector<16x16xf32> -> vector<16x16xf32>
    %56 = arith.addf %53, %55 : vector<16x16xf32>
    %c0_44 = arith.constant 0 : index
    %c0_45 = arith.constant 0 : index
    %57 = vector.load %arg18[%c0_44, %c0_45] : memref<1x16xf32, #tpu.memory_space<vmem>>, vector<1x16xf32>
    %58 = vector.broadcast %57 : vector<1x16xf32> to vector<16x16xf32>
    %59 = arith.addf %56, %58 : vector<16x16xf32>
    %60 = math.tanh %59 : vector<16x16xf32>
    %61 = arith.truncf %60 : vector<16x16xf32> to vector<16x16xbf16>
    %c0_46 = arith.constant 0 : index
    %c0_47 = arith.constant 0 : index
    %62 = vector.load %arg19[%c0_46, %c0_47] : memref<16x32xbf16, #tpu.memory_space<vmem>>, vector<16x32xbf16>
    %cst_48 = arith.constant dense<0.000000e+00> : vector<16x32xf32>
    %63 = tpu.matmul %61, %62, %cst_48 {dimension_numbers = #tpu.dot_dimension_numbers<[1], [0], [0], [1], [0, 0, 1, 1], [], []>} : vector<16x16xbf16>, vector<16x32xbf16>, vector<16x32xf32> -> vector<16x32xf32>
    %c0_49 = arith.constant 0 : index
    %c0_50 = arith.constant 0 : index
    %64 = vector.load %arg20[%c0_49, %c0_50] : memref<1x32xf32, #tpu.memory_space<vmem>>, vector<1x32xf32>
    %65 = vector.broadcast %64 : vector<1x32xf32> to vector<16x32xf32>
    %66 = arith.addf %63, %65 : vector<16x32xf32>
    %c0_51 = arith.constant 0 : index
    %c0_52 = arith.constant 0 : index
    %67 = vector.load %arg21[%c0_51, %c0_52] : memref<16x32xbf16, #tpu.memory_space<vmem>>, vector<16x32xbf16>
    %cst_53 = arith.constant dense<0.000000e+00> : vector<16x32xf32>
    %68 = tpu.matmul %61, %67, %cst_53 {dimension_numbers = #tpu.dot_dimension_numbers<[1], [0], [0], [1], [0, 0, 1, 1], [], []>} : vector<16x16xbf16>, vector<16x32xbf16>, vector<16x32xf32> -> vector<16x32xf32>
    %c0_54 = arith.constant 0 : index
    %c0_55 = arith.constant 0 : index
    %69 = vector.load %arg22[%c0_54, %c0_55] : memref<1x32xf32, #tpu.memory_space<vmem>>, vector<1x32xf32>
    %70 = vector.broadcast %69 : vector<1x32xf32> to vector<16x32xf32>
    %71 = arith.addf %68, %70 : vector<16x32xf32>
    %72 = math.absf %71 : vector<16x32xf32>
    %cst_56 = arith.constant 1.000000e+00 : f32
    %73 = vector.broadcast %cst_56 : f32 to vector<16x32xf32>
    %74 = arith.subf %73, %29 : vector<16x32xf32>
    %75 = arith.mulf %74, %66 : vector<16x32xf32>
    %76 = arith.mulf %29, %40 : vector<16x32xf32>
    %77 = arith.addf %75, %76 : vector<16x32xf32>
    %cst_57 = arith.constant 1.000000e+00 : f32
    %78 = vector.broadcast %cst_57 : f32 to vector<16x32xf32>
    %79 = arith.subf %78, %29 : vector<16x32xf32>
    %80 = arith.mulf %79, %72 : vector<16x32xf32>
    %81 = arith.mulf %29, %41 : vector<16x32xf32>
    %82 = arith.addf %80, %81 : vector<16x32xf32>
    %83 = arith.extf %3 : vector<16x32xbf16> to vector<16x32xf32>
    %84 = arith.mulf %83, %77 : vector<16x32xf32>
    %cst_58 = arith.constant 1.000000e+00 : f32
    %85 = vector.broadcast %cst_58 : f32 to vector<16x32xf32>
    %86 = arith.subf %85, %83 : vector<16x32xf32>
    %87 = arith.mulf %86, %40 : vector<16x32xf32>
    %88 = arith.addf %84, %87 : vector<16x32xf32>
    %89 = arith.mulf %83, %82 : vector<16x32xf32>
    %cst_59 = arith.constant 1.000000e+00 : f32
    %90 = vector.broadcast %cst_59 : f32 to vector<16x32xf32>
    %91 = arith.subf %90, %83 : vector<16x32xf32>
    %92 = arith.mulf %91, %41 : vector<16x32xf32>
    %93 = arith.addf %89, %92 : vector<16x32xf32>
    %94 = math.absf %93 : vector<16x32xf32>
    %95 = tpu.concatenate %88, %94 in 1 : vector<16x32xf32>, vector<16x32xf32> -> vector<16x64xf32>
    %c0_60 = arith.constant 0 : index
    %c0_61 = arith.constant 0 : index
    %96 = vector.load %arg23[%c0_60, %c0_61] : memref<16x64xf32, #tpu.memory_space<vmem>>, vector<16x64xf32>
    tpu.vector_store %arg23[%c0_60, %c0_61], %95 {strides = array<i32>} : memref<16x64xf32, #tpu.memory_space<vmem>>, vector<16x64xf32>,
    return
  }
  func.func @transform_0(%arg0: i32) -> (i32, i32) {
    %c0_i32 = arith.constant 0 : i32
    %c0_i32_0 = arith.constant 0 : i32
    return %arg0, %c0_i32 : i32, i32
  }
  func.func @transform_1(%arg0: i32) -> (i32, i32) {
    %c0_i32 = arith.constant 0 : i32
    %c0_i32_0 = arith.constant 0 : i32
    return %arg0, %c0_i32 : i32, i32
  }
  func.func @transform_2(%arg0: i32) -> (i32, i32) {
    %c0_i32 = arith.constant 0 : i32
    %c0_i32_0 = arith.constant 0 : i32
    return %arg0, %c0_i32 : i32, i32
  }
  func.func @transform_3(%arg0: i32) -> (i32, i32) {
    %c0_i32 = arith.constant 0 : i32
    %c0_i32_0 = arith.constant 0 : i32
    return %arg0, %c0_i32 : i32, i32
  }
  func.func @transform_4(%arg0: i32) -> (i32, i32) {
    %c0_i32 = arith.constant 0 : i32
    %c0_i32_0 = arith.constant 0 : i32
    %c0_i32_1 = arith.constant 0 : i32
    return %c0_i32, %c0_i32_0 : i32, i32
  }
  func.func @transform_5(%arg0: i32) -> (i32, i32) {
    %c0_i32 = arith.constant 0 : i32
    %c0_i32_0 = arith.constant 0 : i32
    %c0_i32_1 = arith.constant 0 : i32
    return %c0_i32, %c0_i32_0 : i32, i32
  }
  func.func @transform_6(%arg0: i32) -> (i32, i32) {
    %c0_i32 = arith.constant 0 : i32
    %c0_i32_0 = arith.constant 0 : i32
    %c0_i32_1 = arith.constant 0 : i32
    return %c0_i32, %c0_i32_0 : i32, i32
  }
  func.func @transform_7(%arg0: i32) -> (i32, i32) {
    %c0_i32 = arith.constant 0 : i32
    %c0_i32_0 = arith.constant 0 : i32
    %c0_i32_1 = arith.constant 0 : i32
    return %c0_i32, %c0_i32_0 : i32, i32
  }
  func.func @transform_8(%arg0: i32) -> (i32, i32) {
    %c0_i32 = arith.constant 0 : i32
    %c0_i32_0 = arith.constant 0 : i32
    %c0_i32_1 = arith.constant 0 : i32
    return %c0_i32, %c0_i32_0 : i32, i32
  }
  func.func @transform_9(%arg0: i32) -> (i32, i32) {
    %c0_i32 = arith.constant 0 : i32
    %c0_i32_0 = arith.constant 0 : i32
    %c0_i32_1 = arith.constant 0 : i32
    return %c0_i32, %c0_i32_0 : i32, i32
  }
  func.func @transform_10(%arg0: i32) -> (i32, i32) {
    %c0_i32 = arith.constant 0 : i32
    %c0_i32_0 = arith.constant 0 : i32
    %c0_i32_1 = arith.constant 0 : i32
    return %c0_i32, %c0_i32_0 : i32, i32
  }
  func.func @transform_11(%arg0: i32) -> (i32, i32) {
    %c0_i32 = arith.constant 0 : i32
    %c0_i32_0 = arith.constant 0 : i32
    %c0_i32_1 = arith.constant 0 : i32
    return %c0_i32, %c0_i32_0 : i32, i32
  }
  func.func @transform_12(%arg0: i32) -> (i32, i32) {
    %c0_i32 = arith.constant 0 : i32
    %c0_i32_0 = arith.constant 0 : i32
    %c0_i32_1 = arith.constant 0 : i32
    return %c0_i32, %c0_i32_0 : i32, i32
  }
  func.func @transform_13(%arg0: i32) -> (i32, i32) {
    %c0_i32 = arith.constant 0 : i32
    %c0_i32_0 = arith.constant 0 : i32
    %c0_i32_1 = arith.constant 0 : i32
    return %c0_i32, %c0_i32_0 : i32, i32
  }
  func.func @transform_14(%arg0: i32) -> (i32, i32) {
    %c0_i32 = arith.constant 0 : i32
    %c0_i32_0 = arith.constant 0 : i32
    %c0_i32_1 = arith.constant 0 : i32
    return %c0_i32, %c0_i32_0 : i32, i32
  }
  func.func @transform_15(%arg0: i32) -> (i32, i32) {
    %c0_i32 = arith.constant 0 : i32
    %c0_i32_0 = arith.constant 0 : i32
    %c0_i32_1 = arith.constant 0 : i32
    return %c0_i32, %c0_i32_0 : i32, i32
  }
  func.func @transform_16(%arg0: i32) -> (i32, i32) {
    %c0_i32 = arith.constant 0 : i32
    %c0_i32_0 = arith.constant 0 : i32
    %c0_i32_1 = arith.constant 0 : i32
    return %c0_i32, %c0_i32_0 : i32, i32
  }
  func.func @transform_17(%arg0: i32) -> (i32, i32) {
    %c0_i32 = arith.constant 0 : i32
    %c0_i32_0 = arith.constant 0 : i32
    %c0_i32_1 = arith.constant 0 : i32
    return %c0_i32, %c0_i32_0 : i32, i32
  }
  func.func @transform_18(%arg0: i32) -> (i32, i32) {
    %c0_i32 = arith.constant 0 : i32
    %c0_i32_0 = arith.constant 0 : i32
    %c0_i32_1 = arith.constant 0 : i32
    return %c0_i32, %c0_i32_0 : i32, i32
  }
  func.func @transform_19(%arg0: i32) -> (i32, i32) {
    %c0_i32 = arith.constant 0 : i32
    %c0_i32_0 = arith.constant 0 : i32
    %c0_i32_1 = arith.constant 0 : i32
    return %c0_i32, %c0_i32_0 : i32, i32
  }
  func.func @transform_20(%arg0: i32) -> (i32, i32) {
    %c0_i32 = arith.constant 0 : i32
    %c0_i32_0 = arith.constant 0 : i32
    %c0_i32_1 = arith.constant 0 : i32
    return %c0_i32, %c0_i32_0 : i32, i32
  }
  func.func @transform_21(%arg0: i32) -> (i32, i32) {
    %c0_i32 = arith.constant 0 : i32
    %c0_i32_0 = arith.constant 0 : i32
    %c0_i32_1 = arith.constant 0 : i32
    return %c0_i32, %c0_i32_0 : i32, i32
  }
  func.func @transform_22(%arg0: i32) -> (i32, i32) {
    %c0_i32 = arith.constant 0 : i32
    %c0_i32_0 = arith.constant 0 : i32
    return %arg0, %c0_i32 : i32, i32
  }
}

</mosaic_0001>

<llo_original>
// kernel: tpu_custom_call.1
$region0: #{tpu_custom_call.1}
  #allocation0 [shape = 'u32[]', space=smem, size = 0x4, offset = 0x4, fixed_abs, tag = 'smem constant byte address 0x4 - core index']
  #allocation1 [shape = 'u32[144,128]{1,0:T(1,128)}', space=vmem, size = 0x12000, scoped, tag = 'internal scratch']
  %s0 = inlined_call_operand.hbm [shape: bf16[16,32], index: 0, kind: input, shape index: {}]
  %s1 = inlined_call_operand.hbm [shape: bf16[16,32], index: 1, kind: input, shape index: {}]
  %s2 = inlined_call_operand.hbm [shape: bf16[16,32], index: 2, kind: input, shape index: {}]
  %s3 = inlined_call_operand.hbm [shape: bf16[16,32], index: 3, kind: input, shape index: {}]
  %s4 = inlined_call_operand.vmem [shape: bf16[32,32], index: 4, kind: input, shape index: {}]
  %s5 = inlined_call_operand.vmem [shape: bf16[32,32], index: 5, kind: input, shape index: {}]
  %s6 = inlined_call_operand.vmem [shape: bf16[32,32], index: 6, kind: input, shape index: {}]
  %s7 = inlined_call_operand.vmem [shape: bf16[32,32], index: 7, kind: input, shape index: {}]
  %s8 = inlined_call_operand.vmem [shape: f32[1,32], index: 8, kind: input, shape index: {}]
  %s9 = inlined_call_operand.vmem [shape: bf16[32,32], index: 9, kind: input, shape index: {}]
  %s10 = inlined_call_operand.hbm [shape: f32[1,32], index: 10, kind: input, shape index: {}]
  %s11 = inlined_call_operand.vmem [shape: bf16[32,32], index: 11, kind: input, shape index: {}]
  %s12 = inlined_call_operand.hbm [shape: f32[1,32], index: 12, kind: input, shape index: {}]
  %s13 = inlined_call_operand.vmem [shape: bf16[32,16], index: 13, kind: input, shape index: {}]
  %s14 = inlined_call_operand.vmem [shape: bf16[32,16], index: 14, kind: input, shape index: {}]
  %s15 = inlined_call_operand.vmem [shape: bf16[32,16], index: 15, kind: input, shape index: {}]
  %s16 = inlined_call_operand.vmem [shape: bf16[32,16], index: 16, kind: input, shape index: {}]
  %s17 = inlined_call_operand.vmem [shape: f32[1,16], index: 17, kind: input, shape index: {}]
  %s18 = inlined_call_operand.vmem [shape: bf16[16,32], index: 18, kind: input, shape index: {}]
  %s19 = inlined_call_operand.vmem [shape: f32[1,32], index: 19, kind: input, shape index: {}]
  %s20 = inlined_call_operand.vmem [shape: bf16[16,32], index: 20, kind: input, shape index: {}]
  %s21 = inlined_call_operand.vmem [shape: f32[1,32], index: 21, kind: input, shape index: {}]
  %s22 = inlined_call_operand.hbm [shape: f32[16,64], index: 22, kind: output, shape index: {}]
  %s23 = sld [smem:[#allocation0]]
  $region122: #{tpu_custom_call.1} parent=0
    _
  %s25 = ssub.s32 1, %s23
  %s26 = scalar_select 0, %s25, %s23
  $region1: #{tpu_custom_call.1} parent=0
    #allocation2 [shape = 'u8[4096]{0}', space=vmem, size = 0x1000, scoped, tag = 'input window, operand 0, single buffered']
    #allocation3 [shape = 's32[1]{0}', space=sflag, size = 0x4, scoped, tag = 'scoped memory for tpu_custom_call.1']
    #allocation4 [shape = 's32[1]{0}', space=sflag, size = 0x4, scoped, tag = 'scoped memory for tpu_custom_call.1']
    #allocation5 [shape = 'u8[4096]{0}', space=vmem, size = 0x1000, scoped, tag = 'input window, operand 1, single buffered']
    #allocation6 [shape = 's32[1]{0}', space=sflag, size = 0x4, scoped, tag = 'scoped memory for tpu_custom_call.1']
    #allocation7 [shape = 'u8[4096]{0}', space=vmem, size = 0x1000, scoped, tag = 'input window, operand 2, single buffered']
    #allocation8 [shape = 'u8[4096]{0}', space=vmem, size = 0x1000, scoped, tag = 'input window, operand 3, single buffered']
    #allocation9 [shape = 's32[1]{0}', space=sflag, size = 0x4, scoped, tag = 'scoped memory for tpu_custom_call.1']
    #allocation10 [shape = 'u8[512]{0}', space=vmem, size = 0x400, scoped, tag = 'input window, operand 10, single buffered']
    #allocation11 [shape = 'u8[512]{0}', space=vmem, size = 0x400, scoped, tag = 'input window, operand 12, single buffered']
    #allocation12 [shape = 's32[1]{0}', space=sflag, size = 0x4, scoped, tag = 'scoped memory for tpu_custom_call.1']
    #allocation13 [shape = 'u8[8192]{0}', space=vmem, size = 0x2000, scoped, tag = 'output window, operand 0, single buffered']
    %27 = vsyncpa [#allocation3], 0
    %28 = vsyncpa [#allocation6], 0
    %29 = vsyncpa [#allocation9], 0
    %30 = vsyncpa [#allocation12], 0
    %31 = vsyncpa [#allocation4], 0
    // Predicated region
    $region2: #{tpu_custom_call.1} parent=1 // pred_check
      _
    $region3: #{tpu_custom_call.1} parent=1 // pred_check_branch
      %33 = sbr.rel (0) target = $region5
    $region4: #{tpu_custom_call.1} parent=1 // pred_region
      %s35 = ssub.s32 128, 128
      %36 = vsyncadd [#allocation3], %s35
      %s37 = sshll.u32 [#allocation2], 4
      %s38 = int_to_ptr.vmem [resolvable:$true] %s37
      %43 = dma.hbm_to_vmem [thread:$0]  %s0, 128, %s38, [#allocation3], 64, 64, 4
    $region5: #{tpu_custom_call.1} parent=1 // pred_fallthru
      _
    // Predicated region
    $region6: #{tpu_custom_call.1} parent=1 // pred_check
      _
    $region7: #{tpu_custom_call.1} parent=1 // pred_check_branch
      %45 = sbr.rel (0) target = $region9
    $region8: #{tpu_custom_call.1} parent=1 // pred_region
      %s47 = ssub.s32 128, 128
      %48 = vsyncadd [#allocation6], %s47
      %s49 = sshll.u32 [#allocation5], 4
      %s50 = int_to_ptr.vmem [resolvable:$true] %s49
      %55 = dma.hbm_to_vmem [thread:$0]  %s1, 128, %s50, [#allocation6], 64, 64, 4
    $region9: #{tpu_custom_call.1} parent=1 // pred_fallthru
      _
    // Predicated region
    $region10: #{tpu_custom_call.1} parent=1 // pred_check
      _
    $region11: #{tpu_custom_call.1} parent=1 // pred_check_branch
      %57 = sbr.rel (0) target = $region13
    $region12: #{tpu_custom_call.1} parent=1 // pred_region
      %s59 = ssub.s32 128, 128
      %60 = vsyncadd [#allocation6], %s59
      %s61 = sshll.u32 [#allocation7], 4
      %s62 = int_to_ptr.vmem [resolvable:$true] %s61
      %67 = dma.hbm_to_vmem [thread:$0]  %s2, 128, %s62, [#allocation6], 64, 64, 4
    $region13: #{tpu_custom_call.1} parent=1 // pred_fallthru
      _
    // Predicated region
    $region14: #{tpu_custom_call.1} parent=1 // pred_check
      _
    $region15: #{tpu_custom_call.1} parent=1 // pred_check_branch
      %69 = sbr.rel (0) target = $region17
    $region16: #{tpu_custom_call.1} parent=1 // pred_region
      %s71 = ssub.s32 128, 128
      %72 = vsyncadd [#allocation9], %s71
      %s73 = sshll.u32 [#allocation8], 4
      %s74 = int_to_ptr.vmem [resolvable:$true] %s73
      %79 = dma.hbm_to_vmem [thread:$0]  %s3, 128, %s74, [#allocation9], 64, 64, 4
    $region17: #{tpu_custom_call.1} parent=1 // pred_fallthru
      _
    // Predicated region
    $region18: #{tpu_custom_call.1} parent=1 // pred_check
      _
    $region19: #{tpu_custom_call.1} parent=1 // pred_check_branch
      %81 = sbr.rel (0) target = $region21
    $region20: #{tpu_custom_call.1} parent=1 // pred_region
      _
    $region21: #{tpu_custom_call.1} parent=1 // pred_fallthru
      _
    // Predicated region
    $region22: #{tpu_custom_call.1} parent=1 // pred_check
      _
    $region23: #{tpu_custom_call.1} parent=1 // pred_check_branch
      %83 = sbr.rel (0) target = $region25
    $region24: #{tpu_custom_call.1} parent=1 // pred_region
      _
    $region25: #{tpu_custom_call.1} parent=1 // pred_fallthru
      _
    // Predicated region
    $region26: #{tpu_custom_call.1} parent=1 // pred_check
      _
    $region27: #{tpu_custom_call.1} parent=1 // pred_check_branch
      %85 = sbr.rel (0) target = $region29
    $region28: #{tpu_custom_call.1} parent=1 // pred_region
      _
    $region29: #{tpu_custom_call.1} parent=1 // pred_fallthru
      _
    // Predicated region
    $region30: #{tpu_custom_call.1} parent=1 // pred_check
      _
    $region31: #{tpu_custom_call.1} parent=1 // pred_check_branch
      %87 = sbr.rel (0) target = $region33
    $region32: #{tpu_custom_call.1} parent=1 // pred_region
      _
    $region33: #{tpu_custom_call.1} parent=1 // pred_fallthru
      _
    // Predicated region
    $region34: #{tpu_custom_call.1} parent=1 // pred_check
      _
    $region35: #{tpu_custom_call.1} parent=1 // pred_check_branch
      %89 = sbr.rel (0) target = $region37
    $region36: #{tpu_custom_call.1} parent=1 // pred_region
      _
    $region37: #{tpu_custom_call.1} parent=1 // pred_fallthru
      _
    // Predicated region
    $region38: #{tpu_custom_call.1} parent=1 // pred_check
      _
    $region39: #{tpu_custom_call.1} parent=1 // pred_check_branch
      %91 = sbr.rel (0) target = $region41
    $region40: #{tpu_custom_call.1} parent=1 // pred_region
      _
    $region41: #{tpu_custom_call.1} parent=1 // pred_fallthru
      _
    // Predicated region
    $region42: #{tpu_custom_call.1} parent=1 // pred_check
      _
    $region43: #{tpu_custom_call.1} parent=1 // pred_check_branch
      %93 = sbr.rel (0) target = $region45
    $region44: #{tpu_custom_call.1} parent=1 // pred_region
      %s95 = ssub.s32 16, 16
      %96 = vsyncadd [#allocation9], %s95
      %s98 = sshll.u32 [#allocation10], 4
      %s99 = int_to_ptr.vmem [resolvable:$true] %s98
      %101 = dma.hbm_to_vmem [thread:$0]  %s10, 16, %s99, [#allocation9]
    $region45: #{tpu_custom_call.1} parent=1 // pred_fallthru
      _
    // Predicated region
    $region46: #{tpu_custom_call.1} parent=1 // pred_check
      _
    $region47: #{tpu_custom_call.1} parent=1 // pred_check_branch
      %103 = sbr.rel (0) target = $region49
    $region48: #{tpu_custom_call.1} parent=1 // pred_region
      _
    $region49: #{tpu_custom_call.1} parent=1 // pred_fallthru
      _
    // Predicated region
    $region50: #{tpu_custom_call.1} parent=1 // pred_check
      _
    $region51: #{tpu_custom_call.1} parent=1 // pred_check_branch
      %105 = sbr.rel (0) target = $region53
    $region52: #{tpu_custom_call.1} parent=1 // pred_region
      %s107 = ssub.s32 16, 16
      %108 = vsyncadd [#allocation12], %s107
      %s110 = sshll.u32 [#allocation11], 4
      %s111 = int_to_ptr.vmem [resolvable:$true] %s110
      %113 = dma.hbm_to_vmem [thread:$0]  %s12, 16, %s111, [#allocation12]
    $region53: #{tpu_custom_call.1} parent=1 // pred_fallthru
      _
    // Predicated region
    $region54: #{tpu_custom_call.1} parent=1 // pred_check
      _
    $region55: #{tpu_custom_call.1} parent=1 // pred_check_branch
      %115 = sbr.rel (0) target = $region57
    $region56: #{tpu_custom_call.1} parent=1 // pred_region
      _
    $region57: #{tpu_custom_call.1} parent=1 // pred_fallthru
      _
    // Predicated region
    $region58: #{tpu_custom_call.1} parent=1 // pred_check
      _
    $region59: #{tpu_custom_call.1} parent=1 // pred_check_branch
      %117 = sbr.rel (0) target = $region61
    $region60: #{tpu_custom_call.1} parent=1 // pred_region
      _
    $region61: #{tpu_custom_call.1} parent=1 // pred_fallthru
      _
    // Predicated region
    $region62: #{tpu_custom_call.1} parent=1 // pred_check
      _
    $region63: #{tpu_custom_call.1} parent=1 // pred_check_branch
      %119 = sbr.rel (0) target = $region65
    $region64: #{tpu_custom_call.1} parent=1 // pred_region
      _
    $region65: #{tpu_custom_call.1} parent=1 // pred_fallthru
      _
    // Predicated region
    $region66: #{tpu_custom_call.1} parent=1 // pred_check
      _
    $region67: #{tpu_custom_call.1} parent=1 // pred_check_branch
      %121 = sbr.rel (0) target = $region69
    $region68: #{tpu_custom_call.1} parent=1 // pred_region
      _
    $region69: #{tpu_custom_call.1} parent=1 // pred_fallthru
      _
    // Predicated region
    $region70: #{tpu_custom_call.1} parent=1 // pred_check
      _
    $region71: #{tpu_custom_call.1} parent=1 // pred_check_branch
      %123 = sbr.rel (0) target = $region73
    $region72: #{tpu_custom_call.1} parent=1 // pred_region
      _
    $region73: #{tpu_custom_call.1} parent=1 // pred_fallthru
      _
    // Predicated region
    $region74: #{tpu_custom_call.1} parent=1 // pred_check
      _
    $region75: #{tpu_custom_call.1} parent=1 // pred_check_branch
      %125 = sbr.rel (0) target = $region77
    $region76: #{tpu_custom_call.1} parent=1 // pred_region
      _
    $region77: #{tpu_custom_call.1} parent=1 // pred_fallthru
      _
    // Predicated region
    $region78: #{tpu_custom_call.1} parent=1 // pred_check
      _
    $region79: #{tpu_custom_call.1} parent=1 // pred_check_branch
      %127 = sbr.rel (0) target = $region81
    $region80: #{tpu_custom_call.1} parent=1 // pred_region
      _
    $region81: #{tpu_custom_call.1} parent=1 // pred_fallthru
      _
    // Predicated region
    $region82: #{tpu_custom_call.1} parent=1 // pred_check
      _
    $region83: #{tpu_custom_call.1} parent=1 // pred_check_branch
      %129 = sbr.rel (0) target = $region85
    $region84: #{tpu_custom_call.1} parent=1 // pred_region
      _
    $region85: #{tpu_custom_call.1} parent=1 // pred_fallthru
      _
    // Predicated region
    $region86: #{tpu_custom_call.1} parent=1 // pred_check
      _
    $region87: #{tpu_custom_call.1} parent=1 // pred_check_branch
      %131 = sbr.rel (0) target = $region89
    $region88: #{tpu_custom_call.1} parent=1 // pred_region
      _
    $region89: #{tpu_custom_call.1} parent=1 // pred_fallthru
      _
    // Predicated region
    $region90: #{tpu_custom_call.1} parent=1 // pred_check
      _
    $region91: #{tpu_custom_call.1} parent=1 // pred_check_branch
      %133 = sbr.rel (0) target = $region93
    $region92: #{tpu_custom_call.1} parent=1 // pred_region
      %134 = dma.done [#allocation3], 128
    $region93: #{tpu_custom_call.1} parent=1 // pred_fallthru
      _
    // Predicated region
    $region94: #{tpu_custom_call.1} parent=1 // pred_check
      _
    $region95: #{tpu_custom_call.1} parent=1 // pred_check_branch
      %136 = sbr.rel (0) target = $region97
    $region96: #{tpu_custom_call.1} parent=1 // pred_region
      %137 = dma.done [#allocation6], 128
    $region97: #{tpu_custom_call.1} parent=1 // pred_fallthru
      _
    // Predicated region
    $region98: #{tpu_custom_call.1} parent=1 // pred_check
      _
    $region99: #{tpu_custom_call.1} parent=1 // pred_check_branch
      %139 = sbr.rel (0) target = $region101
    $region100: #{tpu_custom_call.1} parent=1 // pred_region
      %140 = dma.done [#allocation6], 128
    $region101: #{tpu_custom_call.1} parent=1 // pred_fallthru
      _
    // Predicated region
    $region102: #{tpu_custom_call.1} parent=1 // pred_check
      _
    $region103: #{tpu_custom_call.1} parent=1 // pred_check_branch
      %142 = sbr.rel (0) target = $region105
    $region104: #{tpu_custom_call.1} parent=1 // pred_region
      %143 = dma.done [#allocation9], 128
    $region105: #{tpu_custom_call.1} parent=1 // pred_fallthru
      _
    // Predicated region
    $region106: #{tpu_custom_call.1} parent=1 // pred_check
      _
    $region107: #{tpu_custom_call.1} parent=1 // pred_check_branch
      %145 = sbr.rel (0) target = $region109
    $region108: #{tpu_custom_call.1} parent=1 // pred_region
      %146 = dma.done [#allocation9], 16
    $region109: #{tpu_custom_call.1} parent=1 // pred_fallthru
      _
    // Predicated region
    $region110: #{tpu_custom_call.1} parent=1 // pred_check
      _
    $region111: #{tpu_custom_call.1} parent=1 // pred_check_branch
      %148 = sbr.rel (0) target = $region113
    $region112: #{tpu_custom_call.1} parent=1 // pred_region
      %149 = dma.done [#allocation12], 16
    $region113: #{tpu_custom_call.1} parent=1 // pred_fallthru
      _
    %v151 = vld [vmem:[#allocation2] sm:$0xf]
    %v152 = vld [vmem:[#allocation2 + $0x4] sm:$0xf]
    %v153 = vld [vmem:[#allocation5] sm:$0xf]
    %v154 = vld [vmem:[#allocation5 + $0x4] sm:$0xf]
    %v155 = vld [vmem:[#allocation7] sm:$0xf]
    %v156 = vld [vmem:[#allocation7 + $0x4] sm:$0xf]
    %v157 = vld [vmem:[#allocation8] sm:$0xf]
    %v158 = vld [vmem:[#allocation8 + $0x4] sm:$0xf]
    %v159 = vld [vmem:[%s4] sm:$0xf]
    %v160 = vld [vmem:[%s4 + $0x4] sm:$0xf]
    %v161 = vld [vmem:[%s4 + $0x8] sm:$0xf]
    %v162 = vld [vmem:[%s4 + $0xc] sm:$0xf]
    %v163 = vld [vmem:[%s5] sm:$0xf]
    %v164 = vld [vmem:[%s5 + $0x4] sm:$0xf]
    %v165 = vld [vmem:[%s5 + $0x8] sm:$0xf]
    %v166 = vld [vmem:[%s5 + $0xc] sm:$0xf]
    %v169 = vunpack.c.l.b16 %v153
    %v170 = vunpack.c.l.b16 %v154
    %v171 = vpack.c.b16 %v170, %v169
    %v176 = vunpack.c.l.b16 %v163
    %v177 = vunpack.c.l.b16 %v164
    %v178 = vunpack.c.l.b16 %v165
    %v179 = vunpack.c.l.b16 %v166
    %v180 = vpack.c.b16 %v177, %v176
    %v181 = vpack.c.b16 %v179, %v178
    %vm184 = vcmask 261120
    %v186 = vsel %vm184, %v171, 0
    %188 = vmatprep.subr.bf16.mxu0 0
    %189 = vmatpush1.bf16.msra.mxu0 %v180
    %190 = vmatprep.subr.bf16.mxu0 0
    %191 = vmatpush1.bf16.msra.mxu0 %v181
    %192 = vmatprep.subr.bf16.mxu0 0
    %193 = vmatpush1.bf16.msra.mxu0 0
    %194 = vmatprep.subr.bf16.mxu0 0
    %195 = vmatpush1.bf16.msra.mxu0 0
    %196 = vmatprep.subr.bf16.mxu0 0
    %197 = vmatpush1.bf16.msra.mxu0 0
    %198 = vmatprep.subr.bf16.mxu0 0
    %199 = vmatpush1.bf16.msra.mxu0 0
    %200 = vmatprep.subr.bf16.mxu0 0
    %201 = vmatpush1.bf16.msra.mxu0 0
    %202 = vmatprep.subr.bf16.mxu0 0
    %203 = vmatpush1.bf16.msra.mxu0 0
    %204 = vmatprep.subr.bf16.mxu0 0
    %205 = vmatpush1.bf16.msra.mxu0 0
    %206 = vmatprep.subr.bf16.mxu0 0
    %207 = vmatpush1.bf16.msra.mxu0 0
    %208 = vmatprep.subr.bf16.mxu0 0
    %209 = vmatpush1.bf16.msra.mxu0 0
    %210 = vmatprep.subr.bf16.mxu0 0
    %211 = vmatpush1.bf16.msra.mxu0 0
    %212 = vmatprep.subr.bf16.mxu0 0
    %213 = vmatpush1.bf16.msra.mxu0 0
    %214 = vmatprep.subr.bf16.mxu0 0
    %215 = vmatpush1.bf16.msra.mxu0 0
    %216 = vmatprep.subr.bf16.mxu0 0
    %217 = vmatpush1.bf16.msra.mxu0 0
    %218 = vmatprep.subr.bf16.mxu0 0
    %219 = vmatpush1.bf16.msra.mxu0 0
    %220 = vmatprep.mubr.bf16.mxu0 0
    %221 = vmatmul.mubr.bf16.gmra.mrb[0].mxu0 %v186
    %v222 = vpop.f32.mrb[0].mxu0
    %v223 = vadd.f32 0.0, %v222
    %v224 = vpop.f32.mrb[0].mxu0
    %v225 = vpop.f32.mrb[0].mxu0
    %v226 = vadd.f32 0.0, %v225
    %v227 = vpop.f32.mrb[0].mxu0
    %228 = vdwg.mxu0
    %v231 = vunpack.c.l.b16 %v151
    %v232 = vunpack.c.l.b16 %v152
    %v233 = vpack.c.b16 %v232, %v231
    %v238 = vunpack.c.l.b16 %v159
    %v239 = vunpack.c.l.b16 %v160
    %v240 = vunpack.c.l.b16 %v161
    %v241 = vunpack.c.l.b16 %v162
    %v242 = vpack.c.b16 %v239, %v238
    %v243 = vpack.c.b16 %v241, %v240
    %v247 = vsel %vm184, %v233, 0
    %249 = vmatprep.subr.bf16.mxu0 0
    %250 = vmatpush1.bf16.msra.mxu0 %v242
    %251 = vmatprep.subr.bf16.mxu0 0
    %252 = vmatpush1.bf16.msra.mxu0 %v243
    %253 = vmatprep.subr.bf16.mxu0 0
    %254 = vmatpush1.bf16.msra.mxu0 0
    %255 = vmatprep.subr.bf16.mxu0 0
    %256 = vmatpush1.bf16.msra.mxu0 0
    %257 = vmatprep.subr.bf16.mxu0 0
    %258 = vmatpush1.bf16.msra.mxu0 0
    %259 = vmatprep.subr.bf16.mxu0 0
    %260 = vmatpush1.bf16.msra.mxu0 0
    %261 = vmatprep.subr.bf16.mxu0 0
    %262 = vmatpush1.bf16.msra.mxu0 0
    %263 = vmatprep.subr.bf16.mxu0 0
    %264 = vmatpush1.bf16.msra.mxu0 0
    %265 = vmatprep.subr.bf16.mxu0 0
    %266 = vmatpush1.bf16.msra.mxu0 0
    %267 = vmatprep.subr.bf16.mxu0 0
    %268 = vmatpush1.bf16.msra.mxu0 0
    %269 = vmatprep.subr.bf16.mxu0 0
    %270 = vmatpush1.bf16.msra.mxu0 0
    %271 = vmatprep.subr.bf16.mxu0 0
    %272 = vmatpush1.bf16.msra.mxu0 0
    %273 = vmatprep.subr.bf16.mxu0 0
    %274 = vmatpush1.bf16.msra.mxu0 0
    %275 = vmatprep.subr.bf16.mxu0 0
    %276 = vmatpush1.bf16.msra.mxu0 0
    %277 = vmatprep.subr.bf16.mxu0 0
    %278 = vmatpush1.bf16.msra.mxu0 0
    %279 = vmatprep.subr.bf16.mxu0 0
    %280 = vmatpush1.bf16.msra.mxu0 0
    %281 = vmatprep.mubr.bf16.mxu0 0
    %282 = vmatmul.mubr.bf16.gmra.mrb[0].mxu0 %v247
    %v283 = vpop.f32.mrb[0].mxu0
    %v284 = vadd.f32 %v223, %v283
    %v285 = vpop.f32.mrb[0].mxu0
    %v286 = vpop.f32.mrb[0].mxu0
    %v287 = vadd.f32 %v226, %v286
    %v288 = vpop.f32.mrb[0].mxu0
    %289 = vdwg.mxu0
    %v290 = vld [vmem:[%s6] sm:$0xf]
    %v291 = vld [vmem:[%s6 + $0x4] sm:$0xf]
    %v292 = vld [vmem:[%s6 + $0x8] sm:$0xf]
    %v293 = vld [vmem:[%s6 + $0xc] sm:$0xf]
    %v296 = vunpack.c.l.b16 %v155
    %v297 = vunpack.c.l.b16 %v156
    %v298 = vpack.c.b16 %v297, %v296
    %v303 = vunpack.c.l.b16 %v290
    %v304 = vunpack.c.l.b16 %v291
    %v305 = vunpack.c.l.b16 %v292
    %v306 = vunpack.c.l.b16 %v293
    %v307 = vpack.c.b16 %v304, %v303
    %v308 = vpack.c.b16 %v306, %v305
    %v312 = vsel %vm184, %v298, 0
    %314 = vmatprep.subr.bf16.mxu0 0
    %315 = vmatpush1.bf16.msra.mxu0 %v307
    %316 = vmatprep.subr.bf16.mxu0 0
    %317 = vmatpush1.bf16.msra.mxu0 %v308
    %318 = vmatprep.subr.bf16.mxu0 0
    %319 = vmatpush1.bf16.msra.mxu0 0
    %320 = vmatprep.subr.bf16.mxu0 0
    %321 = vmatpush1.bf16.msra.mxu0 0
    %322 = vmatprep.subr.bf16.mxu0 0
    %323 = vmatpush1.bf16.msra.mxu0 0
    %324 = vmatprep.subr.bf16.mxu0 0
    %325 = vmatpush1.bf16.msra.mxu0 0
    %326 = vmatprep.subr.bf16.mxu0 0
    %327 = vmatpush1.bf16.msra.mxu0 0
    %328 = vmatprep.subr.bf16.mxu0 0
    %329 = vmatpush1.bf16.msra.mxu0 0
    %330 = vmatprep.subr.bf16.mxu0 0
    %331 = vmatpush1.bf16.msra.mxu0 0
    %332 = vmatprep.subr.bf16.mxu0 0
    %333 = vmatpush1.bf16.msra.mxu0 0
    %334 = vmatprep.subr.bf16.mxu0 0
    %335 = vmatpush1.bf16.msra.mxu0 0
    %336 = vmatprep.subr.bf16.mxu0 0
    %337 = vmatpush1.bf16.msra.mxu0 0
    %338 = vmatprep.subr.bf16.mxu0 0
    %339 = vmatpush1.bf16.msra.mxu0 0
    %340 = vmatprep.subr.bf16.mxu0 0
    %341 = vmatpush1.bf16.msra.mxu0 0
    %342 = vmatprep.subr.bf16.mxu0 0
    %343 = vmatpush1.bf16.msra.mxu0 0
    %344 = vmatprep.subr.bf16.mxu0 0
    %345 = vmatpush1.bf16.msra.mxu0 0
    %346 = vmatprep.mubr.bf16.mxu0 0
    %347 = vmatmul.mubr.bf16.gmra.mrb[0].mxu0 %v312
    %v348 = vpop.f32.mrb[0].mxu0
    %v349 = vadd.f32 0.0, %v348
    %v350 = vpop.f32.mrb[0].mxu0
    %v351 = vpop.f32.mrb[0].mxu0
    %v352 = vadd.f32 0.0, %v351
    %v353 = vpop.f32.mrb[0].mxu0
    %354 = vdwg.mxu0
    %v355 = vadd.f32 %v284, %v349
    %v356 = vadd.f32 %v287, %v352
    %v357 = vld [vmem:[%s7] sm:$0xf]
    %v358 = vld [vmem:[%s7 + $0x4] sm:$0xf]
    %v359 = vld [vmem:[%s7 + $0x8] sm:$0xf]
    %v360 = vld [vmem:[%s7 + $0xc] sm:$0xf]
    %v363 = vunpack.c.l.b16 %v157
    %v364 = vunpack.c.l.b16 %v158
    %v365 = vpack.c.b16 %v364, %v363
    %v370 = vunpack.c.l.b16 %v357
    %v371 = vunpack.c.l.b16 %v358
    %v372 = vunpack.c.l.b16 %v359
    %v373 = vunpack.c.l.b16 %v360
    %v374 = vpack.c.b16 %v371, %v370
    %v375 = vpack.c.b16 %v373, %v372
    %v379 = vsel %vm184, %v365, 0
    %381 = vmatprep.subr.bf16.mxu0 0
    %382 = vmatpush1.bf16.msra.mxu0 %v374
    %383 = vmatprep.subr.bf16.mxu0 0
    %384 = vmatpush1.bf16.msra.mxu0 %v375
    %385 = vmatprep.subr.bf16.mxu0 0
    %386 = vmatpush1.bf16.msra.mxu0 0
    %387 = vmatprep.subr.bf16.mxu0 0
    %388 = vmatpush1.bf16.msra.mxu0 0
    %389 = vmatprep.subr.bf16.mxu0 0
    %390 = vmatpush1.bf16.msra.mxu0 0
    %391 = vmatprep.subr.bf16.mxu0 0
    %392 = vmatpush1.bf16.msra.mxu0 0
    %393 = vmatprep.subr.bf16.mxu0 0
    %394 = vmatpush1.bf16.msra.mxu0 0
    %395 = vmatprep.subr.bf16.mxu0 0
    %396 = vmatpush1.bf16.msra.mxu0 0
    %397 = vmatprep.subr.bf16.mxu0 0
    %398 = vmatpush1.bf16.msra.mxu0 0
    %399 = vmatprep.subr.bf16.mxu0 0
    %400 = vmatpush1.bf16.msra.mxu0 0
    %401 = vmatprep.subr.bf16.mxu0 0
    %402 = vmatpush1.bf16.msra.mxu0 0
    %403 = vmatprep.subr.bf16.mxu0 0
    %404 = vmatpush1.bf16.msra.mxu0 0
    %405 = vmatprep.subr.bf16.mxu0 0
    %406 = vmatpush1.bf16.msra.mxu0 0
    %407 = vmatprep.subr.bf16.mxu0 0
    %408 = vmatpush1.bf16.msra.mxu0 0
    %409 = vmatprep.subr.bf16.mxu0 0
    %410 = vmatpush1.bf16.msra.mxu0 0
    %411 = vmatprep.subr.bf16.mxu0 0
    %412 = vmatpush1.bf16.msra.mxu0 0
    %413 = vmatprep.mubr.bf16.mxu0 0
    %414 = vmatmul.mubr.bf16.gmra.mrb[0].mxu0 %v379
    %v415 = vpop.f32.mrb[0].mxu0
    %v416 = vadd.f32 0.0, %v415
    %v417 = vpop.f32.mrb[0].mxu0
    %v418 = vpop.f32.mrb[0].mxu0
    %v419 = vadd.f32 0.0, %v418
    %v420 = vpop.f32.mrb[0].mxu0
    %421 = vdwg.mxu0
    %v422 = vadd.f32 %v355, %v416
    %v423 = vadd.f32 %v356, %v419
    %v424 = vld [vmem:[%s8] sm:$0x1]
    %v426 = vlaneseq
    %v427 = vshrl.u32 %v426, 7
    %v428 = vsub.s32 0, %v427
    %v429 = vrot.slane %v424, %v428
    %v431 = vadd.f32 %v422, %v429
    %v432 = vadd.f32 %v423, %v429
    %v433 = vtanh.pop %v431
    %v434 = vtanh.pop %v432
    %v435 = vpack.c.bf16 %v434, %v433
    %v436 = vld [vmem:[%s9] sm:$0xf]
    %v437 = vld [vmem:[%s9 + $0x4] sm:$0xf]
    %v438 = vld [vmem:[%s9 + $0x8] sm:$0xf]
    %v439 = vld [vmem:[%s9 + $0xc] sm:$0xf]
    %v440 = vld [vmem:[#allocation10] sm:$0x1]
    %v442 = vlaneseq
    %v443 = vshrl.u32 %v442, 7
    %v444 = vsub.s32 0, %v443
    %v445 = vrot.slane %v440, %v444
    %v451 = vunpack.c.l.b16 %v436
    %v452 = vunpack.c.l.b16 %v437
    %v453 = vunpack.c.l.b16 %v438
    %v454 = vunpack.c.l.b16 %v439
    %v455 = vpack.c.b16 %v452, %v451
    %v456 = vpack.c.b16 %v454, %v453
    %v460 = vsel %vm184, %v435, 0
    %462 = vmatprep.subr.bf16.mxu0 0
    %463 = vmatpush1.bf16.msra.mxu0 %v455
    %464 = vmatprep.subr.bf16.mxu0 0
    %465 = vmatpush1.bf16.msra.mxu0 %v456
    %466 = vmatprep.subr.bf16.mxu0 0
    %467 = vmatpush1.bf16.msra.mxu0 0
    %468 = vmatprep.subr.bf16.mxu0 0
    %469 = vmatpush1.bf16.msra.mxu0 0
    %470 = vmatprep.subr.bf16.mxu0 0
    %471 = vmatpush1.bf16.msra.mxu0 0
    %472 = vmatprep.subr.bf16.mxu0 0
    %473 = vmatpush1.bf16.msra.mxu0 0
    %474 = vmatprep.subr.bf16.mxu0 0
    %475 = vmatpush1.bf16.msra.mxu0 0
    %476 = vmatprep.subr.bf16.mxu0 0
    %477 = vmatpush1.bf16.msra.mxu0 0
    %478 = vmatprep.subr.bf16.mxu0 0
    %479 = vmatpush1.bf16.msra.mxu0 0
    %480 = vmatprep.subr.bf16.mxu0 0
    %481 = vmatpush1.bf16.msra.mxu0 0
    %482 = vmatprep.subr.bf16.mxu0 0
    %483 = vmatpush1.bf16.msra.mxu0 0
    %484 = vmatprep.subr.bf16.mxu0 0
    %485 = vmatpush1.bf16.msra.mxu0 0
    %486 = vmatprep.subr.bf16.mxu0 0
    %487 = vmatpush1.bf16.msra.mxu0 0
    %488 = vmatprep.subr.bf16.mxu0 0
    %489 = vmatpush1.bf16.msra.mxu0 0
    %490 = vmatprep.subr.bf16.mxu0 0
    %491 = vmatpush1.bf16.msra.mxu0 0
    %492 = vmatprep.subr.bf16.mxu0 0
    %493 = vmatpush1.bf16.msra.mxu0 0
    %494 = vmatprep.mubr.bf16.mxu0 0
    %495 = vmatmul.mubr.bf16.gmra.mrb[0].mxu0 %v460
    %v496 = vpop.f32.mrb[0].mxu0
    %v497 = vadd.f32 %v445, %v496
    %v498 = vpop.f32.mrb[0].mxu0
    %v499 = vpop.f32.mrb[0].mxu0
    %v500 = vadd.f32 %v445, %v499
    %v501 = vpop.f32.mrb[0].mxu0
    %502 = vdwg.mxu0
    %v503 = vxor.u32 %v497, 2147483648
    %v504 = vxor.u32 %v500, 2147483648
    %v505 = vmul.f32 %v503, 1.442695
    %v506 = vpow.pop %v505
    %v507 = vmul.f32 %v504, 1.442695
    %v508 = vpow.pop %v507
    %v509 = vadd.f32 %v506, 1.0
    %v510 = vadd.f32 %v508, 1.0
    %v511 = vrcp.pop %v509
    %v512 = vmul.f32 1.0, %v511
    %v513 = vrcp.pop %v510
    %v514 = vmul.f32 1.0, %v513
    %v515 = vld [vmem:[%s11] sm:$0xf]
    %v516 = vld [vmem:[%s11 + $0x4] sm:$0xf]
    %v517 = vld [vmem:[%s11 + $0x8] sm:$0xf]
    %v518 = vld [vmem:[%s11 + $0xc] sm:$0xf]
    %v519 = vld [vmem:[#allocation11] sm:$0x1]
    %v521 = vlaneseq
    %v522 = vshrl.u32 %v521, 7
    %v523 = vsub.s32 0, %v522
    %v524 = vrot.slane %v519, %v523
    %v530 = vunpack.c.l.b16 %v515
    %v531 = vunpack.c.l.b16 %v516
    %v532 = vunpack.c.l.b16 %v517
    %v533 = vunpack.c.l.b16 %v518
    %v534 = vpack.c.b16 %v531, %v530
    %v535 = vpack.c.b16 %v533, %v532
    %538 = vmatprep.subr.bf16.mxu0 0
    %539 = vmatpush1.bf16.msra.mxu0 %v534
    %540 = vmatprep.subr.bf16.mxu0 0
    %541 = vmatpush1.bf16.msra.mxu0 %v535
    %542 = vmatprep.subr.bf16.mxu0 0
    %543 = vmatpush1.bf16.msra.mxu0 0
    %544 = vmatprep.subr.bf16.mxu0 0
    %545 = vmatpush1.bf16.msra.mxu0 0
    %546 = vmatprep.subr.bf16.mxu0 0
    %547 = vmatpush1.bf16.msra.mxu0 0
    %548 = vmatprep.subr.bf16.mxu0 0
    %549 = vmatpush1.bf16.msra.mxu0 0
    %550 = vmatprep.subr.bf16.mxu0 0
    %551 = vmatpush1.bf16.msra.mxu0 0
    %552 = vmatprep.subr.bf16.mxu0 0
    %553 = vmatpush1.bf16.msra.mxu0 0
    %554 = vmatprep.subr.bf16.mxu0 0
    %555 = vmatpush1.bf16.msra.mxu0 0
    %556 = vmatprep.subr.bf16.mxu0 0
    %557 = vmatpush1.bf16.msra.mxu0 0
    %558 = vmatprep.subr.bf16.mxu0 0
    %559 = vmatpush1.bf16.msra.mxu0 0
    %560 = vmatprep.subr.bf16.mxu0 0
    %561 = vmatpush1.bf16.msra.mxu0 0
    %562 = vmatprep.subr.bf16.mxu0 0
    %563 = vmatpush1.bf16.msra.mxu0 0
    %564 = vmatprep.subr.bf16.mxu0 0
    %565 = vmatpush1.bf16.msra.mxu0 0
    %566 = vmatprep.subr.bf16.mxu0 0
    %567 = vmatpush1.bf16.msra.mxu0 0
    %568 = vmatprep.subr.bf16.mxu0 0
    %569 = vmatpush1.bf16.msra.mxu0 0
    %570 = vmatprep.mubr.bf16.mxu0 0
    %571 = vmatmul.mubr.bf16.gmra.mrb[0].mxu0 %v460
    %v572 = vpop.f32.mrb[0].mxu0
    %v573 = vadd.f32 %v524, %v572
    %v574 = vpop.f32.mrb[0].mxu0
    %v575 = vpop.f32.mrb[0].mxu0
    %v576 = vadd.f32 %v524, %v575
    %v577 = vpop.f32.mrb[0].mxu0
    %578 = vdwg.mxu0
    %v579 = vxor.u32 %v573, 2147483648
    %v580 = vxor.u32 %v576, 2147483648
    %v581 = vmul.f32 %v579, 1.442695
    %v582 = vpow.pop %v581
    %v583 = vmul.f32 %v580, 1.442695
    %v584 = vpow.pop %v583
    %v585 = vadd.f32 %v582, 1.0
    %v586 = vadd.f32 %v584, 1.0
    %v587 = vrcp.pop %v585
    %v588 = vmul.f32 1.0, %v587
    %v589 = vrcp.pop %v586
    %v590 = vmul.f32 1.0, %v589
    %v591 = vunpack.c.l.bf16 %v151
    %v592 = vunpack.c.l.bf16 %v152
    %v593 = vunpack.c.l.bf16 %v153
    %v594 = vunpack.c.l.bf16 %v154
    %v595 = vmul.f32 %v591, %v588
    %v596 = vmul.f32 %v592, %v590
    %v597 = vpack.c.bf16 %v596, %v595
    %v598 = vmul.f32 %v593, %v588
    %v599 = vmul.f32 %v594, %v590
    %v600 = vpack.c.bf16 %v599, %v598
    %v601 = vld [vmem:[%s13] sm:$0xf]
    %v602 = vld [vmem:[%s13 + $0x4] sm:$0xf]
    %v603 = vld [vmem:[%s13 + $0x8] sm:$0xf]
    %v604 = vld [vmem:[%s13 + $0xc] sm:$0xf]
    %v605 = vld [vmem:[%s14] sm:$0xf]
    %v606 = vld [vmem:[%s14 + $0x4] sm:$0xf]
    %v607 = vld [vmem:[%s14 + $0x8] sm:$0xf]
    %v608 = vld [vmem:[%s14 + $0xc] sm:$0xf]
    %v613 = vunpack.c.l.b16 %v605
    %v614 = vunpack.c.l.b16 %v606
    %v615 = vunpack.c.l.b16 %v607
    %v616 = vunpack.c.l.b16 %v608
    %v617 = vpack.c.b16 %v614, %v613
    %v618 = vpack.c.b16 %v616, %v615
    %v622 = vsel %vm184, %v600, 0
    %624 = vmatprep.subr.bf16.mxu0 0
    %625 = vmatpush1.bf16.msra.mxu0 %v617
    %626 = vmatprep.subr.bf16.mxu0 0
    %627 = vmatpush1.bf16.msra.mxu0 %v618
    %628 = vmatprep.subr.bf16.mxu0 0
    %629 = vmatpush1.bf16.msra.mxu0 0
    %630 = vmatprep.subr.bf16.mxu0 0
    %631 = vmatpush1.bf16.msra.mxu0 0
    %632 = vmatprep.subr.bf16.mxu0 0
    %633 = vmatpush1.bf16.msra.mxu0 0
    %634 = vmatprep.subr.bf16.mxu0 0
    %635 = vmatpush1.bf16.msra.mxu0 0
    %636 = vmatprep.subr.bf16.mxu0 0
    %637 = vmatpush1.bf16.msra.mxu0 0
    %638 = vmatprep.subr.bf16.mxu0 0
    %639 = vmatpush1.bf16.msra.mxu0 0
    %640 = vmatprep.subr.bf16.mxu0 0
    %641 = vmatpush1.bf16.msra.mxu0 0
    %642 = vmatprep.subr.bf16.mxu0 0
    %643 = vmatpush1.bf16.msra.mxu0 0
    %644 = vmatprep.subr.bf16.mxu0 0
    %645 = vmatpush1.bf16.msra.mxu0 0
    %646 = vmatprep.subr.bf16.mxu0 0
    %647 = vmatpush1.bf16.msra.mxu0 0
    %648 = vmatprep.subr.bf16.mxu0 0
    %649 = vmatpush1.bf16.msra.mxu0 0
    %650 = vmatprep.subr.bf16.mxu0 0
    %651 = vmatpush1.bf16.msra.mxu0 0
    %652 = vmatprep.subr.bf16.mxu0 0
    %653 = vmatpush1.bf16.msra.mxu0 0
    %654 = vmatprep.subr.bf16.mxu0 0
    %655 = vmatpush1.bf16.msra.mxu0 0
    %656 = vmatprep.mubr.bf16.mxu0 0
    %657 = vmatmul.mubr.bf16.gmra.mrb[0].mxu0 %v622
    %v658 = vpop.f32.mrb[0].mxu0
    %v659 = vadd.f32 0.0, %v658
    %v660 = vpop.f32.mrb[0].mxu0
    %v661 = vpop.f32.mrb[0].mxu0
    %v662 = vadd.f32 0.0, %v661
    %v663 = vpop.f32.mrb[0].mxu0
    %664 = vdwg.mxu0
    %v669 = vunpack.c.l.b16 %v601
    %v670 = vunpack.c.l.b16 %v602
    %v671 = vunpack.c.l.b16 %v603
    %v672 = vunpack.c.l.b16 %v604
    %v673 = vpack.c.b16 %v670, %v669
    %v674 = vpack.c.b16 %v672, %v671
    %v678 = vsel %vm184, %v597, 0
    %680 = vmatprep.subr.bf16.mxu0 0
    %681 = vmatpush1.bf16.msra.mxu0 %v673
    %682 = vmatprep.subr.bf16.mxu0 0
    %683 = vmatpush1.bf16.msra.mxu0 %v674
    %684 = vmatprep.subr.bf16.mxu0 0
    %685 = vmatpush1.bf16.msra.mxu0 0
    %686 = vmatprep.subr.bf16.mxu0 0
    %687 = vmatpush1.bf16.msra.mxu0 0
    %688 = vmatprep.subr.bf16.mxu0 0
    %689 = vmatpush1.bf16.msra.mxu0 0
    %690 = vmatprep.subr.bf16.mxu0 0
    %691 = vmatpush1.bf16.msra.mxu0 0
    %692 = vmatprep.subr.bf16.mxu0 0
    %693 = vmatpush1.bf16.msra.mxu0 0
    %694 = vmatprep.subr.bf16.mxu0 0
    %695 = vmatpush1.bf16.msra.mxu0 0
    %696 = vmatprep.subr.bf16.mxu0 0
    %697 = vmatpush1.bf16.msra.mxu0 0
    %698 = vmatprep.subr.bf16.mxu0 0
    %699 = vmatpush1.bf16.msra.mxu0 0
    %700 = vmatprep.subr.bf16.mxu0 0
    %701 = vmatpush1.bf16.msra.mxu0 0
    %702 = vmatprep.subr.bf16.mxu0 0
    %703 = vmatpush1.bf16.msra.mxu0 0
    %704 = vmatprep.subr.bf16.mxu0 0
    %705 = vmatpush1.bf16.msra.mxu0 0
    %706 = vmatprep.subr.bf16.mxu0 0
    %707 = vmatpush1.bf16.msra.mxu0 0
    %708 = vmatprep.subr.bf16.mxu0 0
    %709 = vmatpush1.bf16.msra.mxu0 0
    %710 = vmatprep.subr.bf16.mxu0 0
    %711 = vmatpush1.bf16.msra.mxu0 0
    %712 = vmatprep.mubr.bf16.mxu0 0
    %713 = vmatmul.mubr.bf16.gmra.mrb[0].mxu0 %v678
    %v714 = vpop.f32.mrb[0].mxu0
    %v715 = vadd.f32 %v659, %v714
    %v716 = vpop.f32.mrb[0].mxu0
    %v717 = vpop.f32.mrb[0].mxu0
    %v718 = vadd.f32 %v662, %v717
    %v719 = vpop.f32.mrb[0].mxu0
    %720 = vdwg.mxu0
    %v721 = vld [vmem:[%s15] sm:$0xf]
    %v722 = vld [vmem:[%s15 + $0x4] sm:$0xf]
    %v723 = vld [vmem:[%s15 + $0x8] sm:$0xf]
    %v724 = vld [vmem:[%s15 + $0xc] sm:$0xf]
    %v729 = vunpack.c.l.b16 %v721
    %v730 = vunpack.c.l.b16 %v722
    %v731 = vunpack.c.l.b16 %v723
    %v732 = vunpack.c.l.b16 %v724
    %v733 = vpack.c.b16 %v730, %v729
    %v734 = vpack.c.b16 %v732, %v731
    %737 = vmatprep.subr.bf16.mxu0 0
    %738 = vmatpush1.bf16.msra.mxu0 %v733
    %739 = vmatprep.subr.bf16.mxu0 0
    %740 = vmatpush1.bf16.msra.mxu0 %v734
    %741 = vmatprep.subr.bf16.mxu0 0
    %742 = vmatpush1.bf16.msra.mxu0 0
    %743 = vmatprep.subr.bf16.mxu0 0
    %744 = vmatpush1.bf16.msra.mxu0 0
    %745 = vmatprep.subr.bf16.mxu0 0
    %746 = vmatpush1.bf16.msra.mxu0 0
    %747 = vmatprep.subr.bf16.mxu0 0
    %748 = vmatpush1.bf16.msra.mxu0 0
    %749 = vmatprep.subr.bf16.mxu0 0
    %750 = vmatpush1.bf16.msra.mxu0 0
    %751 = vmatprep.subr.bf16.mxu0 0
    %752 = vmatpush1.bf16.msra.mxu0 0
    %753 = vmatprep.subr.bf16.mxu0 0
    %754 = vmatpush1.bf16.msra.mxu0 0
    %755 = vmatprep.subr.bf16.mxu0 0
    %756 = vmatpush1.bf16.msra.mxu0 0
    %757 = vmatprep.subr.bf16.mxu0 0
    %758 = vmatpush1.bf16.msra.mxu0 0
    %759 = vmatprep.subr.bf16.mxu0 0
    %760 = vmatpush1.bf16.msra.mxu0 0
    %761 = vmatprep.subr.bf16.mxu0 0
    %762 = vmatpush1.bf16.msra.mxu0 0
    %763 = vmatprep.subr.bf16.mxu0 0
    %764 = vmatpush1.bf16.msra.mxu0 0
    %765 = vmatprep.subr.bf16.mxu0 0
    %766 = vmatpush1.bf16.msra.mxu0 0
    %767 = vmatprep.subr.bf16.mxu0 0
    %768 = vmatpush1.bf16.msra.mxu0 0
    %769 = vmatprep.mubr.bf16.mxu0 0
    %770 = vmatmul.mubr.bf16.gmra.mrb[0].mxu0 %v312
    %v771 = vpop.f32.mrb[0].mxu0
    %v772 = vadd.f32 0.0, %v771
    %v773 = vpop.f32.mrb[0].mxu0
    %v774 = vpop.f32.mrb[0].mxu0
    %v775 = vadd.f32 0.0, %v774
    %v776 = vpop.f32.mrb[0].mxu0
    %777 = vdwg.mxu0
    %v778 = vadd.f32 %v715, %v772
    %v779 = vadd.f32 %v718, %v775
    %v780 = vld [vmem:[%s16] sm:$0xf]
    %v781 = vld [vmem:[%s16 + $0x4] sm:$0xf]
    %v782 = vld [vmem:[%s16 + $0x8] sm:$0xf]
    %v783 = vld [vmem:[%s16 + $0xc] sm:$0xf]
    %v788 = vunpack.c.l.b16 %v780
    %v789 = vunpack.c.l.b16 %v781
    %v790 = vunpack.c.l.b16 %v782
    %v791 = vunpack.c.l.b16 %v783
    %v792 = vpack.c.b16 %v789, %v788
    %v793 = vpack.c.b16 %v791, %v790
    %796 = vmatprep.subr.bf16.mxu0 0
    %797 = vmatpush1.bf16.msra.mxu0 %v792
    %798 = vmatprep.subr.bf16.mxu0 0
    %799 = vmatpush1.bf16.msra.mxu0 %v793
    %800 = vmatprep.subr.bf16.mxu0 0
    %801 = vmatpush1.bf16.msra.mxu0 0
    %802 = vmatprep.subr.bf16.mxu0 0
    %803 = vmatpush1.bf16.msra.mxu0 0
    %804 = vmatprep.subr.bf16.mxu0 0
    %805 = vmatpush1.bf16.msra.mxu0 0
    %806 = vmatprep.subr.bf16.mxu0 0
    %807 = vmatpush1.bf16.msra.mxu0 0
    %808 = vmatprep.subr.bf16.mxu0 0
    %809 = vmatpush1.bf16.msra.mxu0 0
    %810 = vmatprep.subr.bf16.mxu0 0
    %811 = vmatpush1.bf16.msra.mxu0 0
    %812 = vmatprep.subr.bf16.mxu0 0
    %813 = vmatpush1.bf16.msra.mxu0 0
    %814 = vmatprep.subr.bf16.mxu0 0
    %815 = vmatpush1.bf16.msra.mxu0 0
    %816 = vmatprep.subr.bf16.mxu0 0
    %817 = vmatpush1.bf16.msra.mxu0 0
    %818 = vmatprep.subr.bf16.mxu0 0
    %819 = vmatpush1.bf16.msra.mxu0 0
    %820 = vmatprep.subr.bf16.mxu0 0
    %821 = vmatpush1.bf16.msra.mxu0 0
    %822 = vmatprep.subr.bf16.mxu0 0
    %823 = vmatpush1.bf16.msra.mxu0 0
    %824 = vmatprep.subr.bf16.mxu0 0
    %825 = vmatpush1.bf16.msra.mxu0 0
    %826 = vmatprep.subr.bf16.mxu0 0
    %827 = vmatpush1.bf16.msra.mxu0 0
    %828 = vmatprep.mubr.bf16.mxu0 0
    %829 = vmatmul.mubr.bf16.gmra.mrb[0].mxu0 %v379
    %v830 = vpop.f32.mrb[0].mxu0
    %v831 = vadd.f32 0.0, %v830
    %v832 = vpop.f32.mrb[0].mxu0
    %v833 = vpop.f32.mrb[0].mxu0
    %v834 = vadd.f32 0.0, %v833
    %v835 = vpop.f32.mrb[0].mxu0
    %836 = vdwg.mxu0
    %v837 = vadd.f32 %v778, %v831
    %v838 = vadd.f32 %v779, %v834
    %v839 = vld [vmem:[%s17] sm:$0x1]
    %v841 = vlaneseq
    %v842 = vshrl.u32 %v841, 7
    %v843 = vsub.s32 0, %v842
    %v844 = vrot.slane %v839, %v843
    %v846 = vadd.f32 %v837, %v844
    %v847 = vadd.f32 %v838, %v844
    %v848 = vtanh.pop %v846
    %v849 = vtanh.pop %v847
    %v850 = vpack.c.bf16 %v849, %v848
    %v851 = vld [vmem:[%s18] sm:$0xf]
    %v852 = vld [vmem:[%s18 + $0x4] sm:$0xf]
    %v853 = vld [vmem:[%s19] sm:$0x1]
    %v855 = vlaneseq
    %v856 = vshrl.u32 %v855, 7
    %v857 = vsub.s32 0, %v856
    %v858 = vrot.slane %v853, %v857
    %v862 = vunpack.c.l.b16 %v851
    %v863 = vunpack.c.l.b16 %v852
    %v864 = vpack.c.b16 %v863, %v862
    %vm866 = vcmask 130048
    %v868 = vsel %vm866, %v850, 0
    %870 = vmatprep.subr.bf16.mxu0 0
    %871 = vmatpush1.bf16.msra.mxu0 %v864
    %872 = vmatprep.subr.bf16.mxu0 0
    %873 = vmatpush1.bf16.msra.mxu0 0
    %874 = vmatprep.subr.bf16.mxu0 0
    %875 = vmatpush1.bf16.msra.mxu0 0
    %876 = vmatprep.subr.bf16.mxu0 0
    %877 = vmatpush1.bf16.msra.mxu0 0
    %878 = vmatprep.subr.bf16.mxu0 0
    %879 = vmatpush1.bf16.msra.mxu0 0
    %880 = vmatprep.subr.bf16.mxu0 0
    %881 = vmatpush1.bf16.msra.mxu0 0
    %882 = vmatprep.subr.bf16.mxu0 0
    %883 = vmatpush1.bf16.msra.mxu0 0
    %884 = vmatprep.subr.bf16.mxu0 0
    %885 = vmatpush1.bf16.msra.mxu0 0
    %886 = vmatprep.subr.bf16.mxu0 0
    %887 = vmatpush1.bf16.msra.mxu0 0
    %888 = vmatprep.subr.bf16.mxu0 0
    %889 = vmatpush1.bf16.msra.mxu0 0
    %890 = vmatprep.subr.bf16.mxu0 0
    %891 = vmatpush1.bf16.msra.mxu0 0
    %892 = vmatprep.subr.bf16.mxu0 0
    %893 = vmatpush1.bf16.msra.mxu0 0
    %894 = vmatprep.subr.bf16.mxu0 0
    %895 = vmatpush1.bf16.msra.mxu0 0
    %896 = vmatprep.subr.bf16.mxu0 0
    %897 = vmatpush1.bf16.msra.mxu0 0
    %898 = vmatprep.subr.bf16.mxu0 0
    %899 = vmatpush1.bf16.msra.mxu0 0
    %900 = vmatprep.subr.bf16.mxu0 0
    %901 = vmatpush1.bf16.msra.mxu0 0
    %902 = vmatprep.mubr.bf16.mxu0 0
    %903 = vmatmul.mubr.bf16.gmra.mrb[0].mxu0 %v868
    %v904 = vpop.f32.mrb[0].mxu0
    %v905 = vadd.f32 %v858, %v904
    %v906 = vpop.f32.mrb[0].mxu0
    %v907 = vpop.f32.mrb[0].mxu0
    %v908 = vadd.f32 %v858, %v907
    %v909 = vpop.f32.mrb[0].mxu0
    %910 = vdwg.mxu0
    %v911 = vld [vmem:[%s20] sm:$0xf]
    %v912 = vld [vmem:[%s20 + $0x4] sm:$0xf]
    %v913 = vld [vmem:[%s21] sm:$0x1]
    %v915 = vlaneseq
    %v916 = vshrl.u32 %v915, 7
    %v917 = vsub.s32 0, %v916
    %v918 = vrot.slane %v913, %v917
    %v922 = vunpack.c.l.b16 %v911
    %v923 = vunpack.c.l.b16 %v912
    %v924 = vpack.c.b16 %v923, %v922
    %926 = vmatprep.subr.bf16.mxu0 0
    %927 = vmatpush1.bf16.msra.mxu0 %v924
    %928 = vmatprep.subr.bf16.mxu0 0
    %929 = vmatpush1.bf16.msra.mxu0 0
    %930 = vmatprep.subr.bf16.mxu0 0
    %931 = vmatpush1.bf16.msra.mxu0 0
    %932 = vmatprep.subr.bf16.mxu0 0
    %933 = vmatpush1.bf16.msra.mxu0 0
    %934 = vmatprep.subr.bf16.mxu0 0
    %935 = vmatpush1.bf16.msra.mxu0 0
    %936 = vmatprep.subr.bf16.mxu0 0
    %937 = vmatpush1.bf16.msra.mxu0 0
    %938 = vmatprep.subr.bf16.mxu0 0
    %939 = vmatpush1.bf16.msra.mxu0 0
    %940 = vmatprep.subr.bf16.mxu0 0
    %941 = vmatpush1.bf16.msra.mxu0 0
    %942 = vmatprep.subr.bf16.mxu0 0
    %943 = vmatpush1.bf16.msra.mxu0 0
    %944 = vmatprep.subr.bf16.mxu0 0
    %945 = vmatpush1.bf16.msra.mxu0 0
    %946 = vmatprep.subr.bf16.mxu0 0
    %947 = vmatpush1.bf16.msra.mxu0 0
    %948 = vmatprep.subr.bf16.mxu0 0
    %949 = vmatpush1.bf16.msra.mxu0 0
    %950 = vmatprep.subr.bf16.mxu0 0
    %951 = vmatpush1.bf16.msra.mxu0 0
    %952 = vmatprep.subr.bf16.mxu0 0
    %953 = vmatpush1.bf16.msra.mxu0 0
    %954 = vmatprep.subr.bf16.mxu0 0
    %955 = vmatpush1.bf16.msra.mxu0 0
    %956 = vmatprep.subr.bf16.mxu0 0
    %957 = vmatpush1.bf16.msra.mxu0 0
    %958 = vmatprep.mubr.bf16.mxu0 0
    %959 = vmatmul.mubr.bf16.gmra.mrb[0].mxu0 %v868
    %v960 = vpop.f32.mrb[0].mxu0
    %v961 = vadd.f32 %v918, %v960
    %v962 = vpop.f32.mrb[0].mxu0
    %v963 = vpop.f32.mrb[0].mxu0
    %v964 = vadd.f32 %v918, %v963
    %v965 = vpop.f32.mrb[0].mxu0
    %966 = vdwg.mxu0
    %v967 = vand.u32 2147483647, %v961
    %v968 = vand.u32 2147483647, %v964
    %v969 = vsub.f32 1.0, %v512
    %v970 = vsub.f32 1.0, %v514
    %v971 = vmul.f32 %v969, %v905
    %v972 = vmul.f32 %v970, %v908
    %v973 = vmul.f32 %v512, %v591
    %v974 = vmul.f32 %v514, %v592
    %v975 = vadd.f32 %v971, %v973
    %v976 = vadd.f32 %v972, %v974
    %v977 = vmul.f32 %v969, %v967
    %v978 = vmul.f32 %v970, %v968
    %v979 = vmul.f32 %v512, %v593
    %v980 = vmul.f32 %v514, %v594
    %v981 = vadd.f32 %v977, %v979
    %v982 = vadd.f32 %v978, %v980
    %v983 = vunpack.c.l.bf16 %v157
    %v984 = vunpack.c.l.bf16 %v158
    %v985 = vmul.f32 %v983, %v975
    %v986 = vmul.f32 %v984, %v976
    %v987 = vsub.f32 1.0, %v983
    %v988 = vsub.f32 1.0, %v984
    %v989 = vmul.f32 %v987, %v591
    %v990 = vmul.f32 %v988, %v592
    %v991 = vadd.f32 %v985, %v989
    %v992 = vadd.f32 %v986, %v990
    %v993 = vmul.f32 %v983, %v981
    %v994 = vmul.f32 %v984, %v982
    %v995 = vmul.f32 %v987, %v593
    %v996 = vmul.f32 %v988, %v594
    %v997 = vadd.f32 %v993, %v995
    %v998 = vadd.f32 %v994, %v996
    %v999 = vand.u32 2147483647, %v997
    %v1000 = vand.u32 2147483647, %v998
    %1003 = vrot.lane.b32.xlu0 %v999, 32
    %v1004 = vpop.permute.xlu0 %1003
    %1005 = vrot.lane.b32.xlu0 %v1000, 32
    %v1006 = vpop.permute.xlu0 %1005
    %v1009 = vsel %vm184, %v991, %v1004
    %v1010 = vsel %vm184, %v992, %v1006
    %vm1011 = vcmask 523264
    %1012 = vst.msk [vmem:[#allocation13] sm:$0xff] %vm1011, %v1009
    %1013 = vst.msk [vmem:[#allocation13 + $0x8] sm:$0xff] %vm1011, %v1010
    // Predicated region
    $region114: #{tpu_custom_call.1} parent=1 // pred_check
      _
    $region115: #{tpu_custom_call.1} parent=1 // pred_check_branch
      %1015 = sbr.rel (0) target = $region117
    $region116: #{tpu_custom_call.1} parent=1 // pred_region
      %s1017 = ssub.s32 256, 256
      %1018 = vsyncadd [#allocation4], %s1017
      %s1019 = sshll.u32 [#allocation13], 4
      %s1020 = int_to_ptr.vmem [resolvable:$true] %s1019
      %1025 = dma.vmem_to_hbm [thread:$0]  %s1020, 256, %s22, [#allocation4], 128, 128, 8
    $region117: #{tpu_custom_call.1} parent=1 // pred_fallthru
      _
    // Predicated region
    $region118: #{tpu_custom_call.1} parent=1 // pred_check
      _
    $region119: #{tpu_custom_call.1} parent=1 // pred_check_branch
      %1027 = sbr.rel (0) target = $region121
    $region120: #{tpu_custom_call.1} parent=1 // pred_region
      %1028 = dma.done [#allocation4], 256
    $region121: #{tpu_custom_call.1} parent=1 // pred_fallthru
      _
    %1029 = vsyncpa [#allocation3], 1
    %1030 = vsyncpa [#allocation6], 1
    %1031 = vsyncpa [#allocation9], 1
    %1032 = vsyncpa [#allocation12], 1
    %1033 = vsyncpa [#allocation4], 1

</llo_original>
